<compile_context>
chip_gen: v6e
topology: v6e:2x2x1
jax: 0.10.0
libtpu: 0.0.40
codegen_flags: <defaults>
</compile_context>

<pallas_src>
import jax
import jax.numpy as jnp
from jax import lax
from jax.experimental import pallas as pl
from jax.experimental.pallas import tpu as pltpu


def _vmem_budget():
    """(small_vmem, vmem_limit_bytes) picked from the chip's physical VMEM at trace time."""
    cap = 128 * 1024 * 1024
    try:
        info = pltpu.get_tpu_info()
        cap = int(getattr(info, "vmem_capacity_bytes", cap))
    except Exception:
        pass
    small = cap <= 64 * 1024 * 1024          # v7x-class part
    limit = min(64 * 1024 * 1024, (cap * 3) // 4)   # leave headroom on 64 MiB parts (~48 MiB)
    return small, int(limit)


def _pick_q_tile(n_pad, small_vmem, max_q_tile=None):
    """Largest 128-aligned query tile that divides the padded N, capped per-chip."""
    cap = 256 if small_vmem else 512
    if max_q_tile is not None:
        cap = min(cap, max_q_tile)
    for t in (512, 256, 128):
        if t <= cap and t <= n_pad and n_pad % t == 0:
            return t
    return n_pad


def _pick_kv_chunk(n_pad):
    for t in (512, 256, 128):
        if n_pad % t == 0:
            return t
    return n_pad


def _make_kernel(n_valid, n_pad, kv_chunk):
    masked = n_valid != n_pad

    def kernel(x_ref, wq_ref, bq_ref, wk_ref, bk_ref, wv_ref, bv_ref,
               gamma_ref, out_ref, attn_ref, k_scr, v_scr):
        # Grid: (batch, q_tile). x_ref is the full bf16 (C, N_pad) map of this batch element
        # (resident across q tiles); out_ref is (C, Tq) f32; attn_ref is (Tq, N_pad) bf16.
        t = pl.program_id(1)
        tq = out_ref.shape[1]

        # --- K / V projections: once per batch element, chunked over N so the f32 temporaries
        # --- stay (·, kv_chunk) instead of (·, N_pad) (caps the t==0 VMEM spike). ---
        @pl.when(t == 0)
        def _():
            for c0 in range(0, n_pad, kv_chunk):
                xc = x_ref[:, c0:c0 + kv_chunk]                                 # (C, chunk) bf16
                k = jnp.dot(wk_ref[...], xc, preferred_element_type=jnp.float32) + bk_ref[...]
                v = jnp.dot(wv_ref[...], xc, preferred_element_type=jnp.float32) + bv_ref[...]
                k_scr[:, c0:c0 + kv_chunk] = k.astype(jnp.bfloat16)             # (Dk, chunk)
                v_scr[:, c0:c0 + kv_chunk] = v.astype(jnp.bfloat16)             # (C,  chunk)

        # --- Current tile of query columns (also the residual input). ---
        start = pl.multiple_of(t * tq, tq)
        xt = x_ref[:, pl.ds(start, tq)]                                          # (C, Tq) bf16

        # Q projection for this tile; f32 accumulation, bf16 MXU inputs.
        q = jnp.dot(wq_ref[...], xt, preferred_element_type=jnp.float32) + bq_ref[...]
        q_bf = q.astype(jnp.bfloat16)                                            # (Dk, Tq)

        # energy[i, j] = <q[:, i], k[:, j]> : contract Dk directly, no materialized transpose.
        energy = lax.dot_general(q_bf, k_scr[...],
                                 dimension_numbers=(((0,), (0,)), ((), ())),
                                 preferred_element_type=jnp.float32)             # (Tq, N_pad)
        if masked:
            col = lax.broadcasted_iota(jnp.int32, (tq, n_pad), 1)
            energy = jnp.where(col < n_valid, energy, jnp.float32(-1e30))

        # Softmax numerator in f32 (padded columns underflow to exactly 0).
        m = jnp.max(energy, axis=-1, keepdims=True)
        p = jnp.exp(energy - m)                                                  # (Tq, N_pad)
        p_bf = p.astype(jnp.bfloat16)

        # out[:, i] = sum_j v[:, j] * p[i, j] on the UNNORMALIZED p -> the MXU does not wait on
        # the row sums / reciprocal; normalization is applied to the small (C, Tq) result.
        o = lax.dot_general(v_scr[...], p_bf,
                            dimension_numbers=(((1,), (1,)), ((), ())),
                            preferred_element_type=jnp.float32)                  # (C, Tq)

        # Row sums directly in (1, Tq) lane orientation via a tiny ones-row matmul
        # (avoids a sublane->lane relayout of the (Tq, 1) lane-reduce result).
        s_row = lax.dot_general(jnp.ones((1, n_pad), jnp.bfloat16), p_bf,
                                dimension_numbers=(((1,), (1,)), ((), ())),
                                preferred_element_type=jnp.float32)              # (1, Tq)
        inv_row = pl.reciprocal(s_row, approx=True)

        # Returned attention tile: normalized with the exact f32 row sums, stored in bf16.
        s = jnp.sum(p, axis=-1, keepdims=True)                                   # (Tq, 1)
        attn_ref[...] = (p * pl.reciprocal(s, approx=True)).astype(attn_ref.dtype)

        gamma = gamma_ref[0]                                                     # SMEM scalar
        out_ref[...] = gamma * (o * inv_row) + xt.astype(jnp.float32)

    return kernel


def self_attn_forward(x_nchw, params, attn_dtype=jnp.bfloat16, max_q_tile=None):
    """x_nchw: (B, C, W, H). Returns (out (B,C,W,H) f32, attention (B,N,N) attn_dtype).

    Note: the attention tensor is returned in bf16 by default (pass attn_dtype=jnp.float32 to
    match the PyTorch dtype exactly); logits/softmax are computed from bf16 MXU operands and the
    softmax denominator uses the approximate EUP reciprocal.
    """
    B, C, W, H = x_nchw.shape
    N = W * H
    Dk = params["wq"].shape[0]
    n_pad = ((N + 127) // 128) * 128                     # lane-align (masked in-kernel)

    small_vmem, vmem_limit = _vmem_budget()
    tq = _pick_q_tile(n_pad, small_vmem, max_q_tile)
    kv_chunk = _pick_kv_chunk(n_pad)
    n_qt = n_pad // tq

    # N-last layout: pure reshape of NCHW; DMA'd in bf16 (halves x read traffic + resident block).
    x_flat = x_nchw.reshape(B, C, N).astype(jnp.bfloat16)
    if n_pad != N:
        x_flat = jnp.pad(x_flat, ((0, 0), (0, 0), (0, n_pad - N)))

    # Weights feed the MXU in bf16; biases stay f32 and broadcast along the lane (N) dim.
    wq = params["wq"].astype(jnp.bfloat16)
    wk = params["wk"].astype(jnp.bfloat16)
    wv = params["wv"].astype(jnp.bfloat16)
    bq = params["bq"].reshape(Dk, 1).astype(jnp.float32)
    bk = params["bk"].reshape(Dk, 1).astype(jnp.float32)
    bv = params["bv"].reshape(C, 1).astype(jnp.float32)
    gamma = params["gamma"].reshape(1).astype(jnp.float32)

    kernel = _make_kernel(N, n_pad, kv_chunk)

    out_flat, attn = pl.pallas_call(
        kernel,
        out_shape=(
            jax.ShapeDtypeStruct((B, C, n_pad), jnp.float32),
            jax.ShapeDtypeStruct((B, n_pad, n_pad), attn_dtype),
        ),
        grid_spec=pltpu.PrefetchScalarGridSpec(
            num_scalar_prefetch=0,
            grid=(B, n_qt),
            in_specs=[
                pl.BlockSpec((None, C, n_pad), lambda b, t: (b, 0, 0)),   # x (bf16, per batch)
                pl.BlockSpec((Dk, C), lambda b, t: (0, 0)),               # Wq (bf16)
                pl.BlockSpec((Dk, 1), lambda b, t: (0, 0)),               # bq
                pl.BlockSpec((Dk, C), lambda b, t: (0, 0)),               # Wk (bf16)
                pl.BlockSpec((Dk, 1), lambda b, t: (0, 0)),               # bk
                pl.BlockSpec((C, C), lambda b, t: (0, 0)),                # Wv (bf16)
                pl.BlockSpec((C, 1), lambda b, t: (0, 0)),                # bv
                pl.BlockSpec(memory_space=pltpu.MemorySpace.SMEM),        # gamma (scalar)
            ],
            out_specs=[
                pl.BlockSpec((None, C, tq), lambda b, t: (b, 0, t)),      # out tile (f32)
                pl.BlockSpec((None, tq, n_pad), lambda b, t: (b, t, 0)),  # attention rows (bf16)
            ],
            scratch_shapes=[
                pltpu.VMEM((Dk, n_pad), jnp.bfloat16),                    # K, resident per batch
                pltpu.VMEM((C, n_pad), jnp.bfloat16),                     # V, resident per batch
            ],
        ),
        compiler_params=pltpu.CompilerParams(
            dimension_semantics=("parallel", "arbitrary"),
            vmem_limit_bytes=vmem_limit,
        ),
    )(x_flat, wq, bq, wk, bk, wv, bv, gamma)

    if n_pad != N:
        out_flat = out_flat[:, :, :N]
        attn = attn[:, :N, :N]
    out = out_flat.reshape(B, C, W, H)
    return out, attn


def _reference_forward(x, params):
    """Pure-JAX f32 reference mirroring the PyTorch forward (NCHW)."""
    B, C, W, H = x.shape
    N = W * H
    xf = x.reshape(B, C, N).astype(jnp.float32)

    def conv1x1(w, b):
        return jnp.einsum("oc,bcn->bon", w, xf) + b.reshape(1, -1, 1)

    q = conv1x1(params["wq"], params["bq"])          # (B, Dk, N)
    k = conv1x1(params["wk"], params["bk"])          # (B, Dk, N)
    v = conv1x1(params["wv"], params["bv"])          # (B, C, N)

    energy = jnp.einsum("bdn,bdm->bnm", q, k)        # (B, N, N)
    attn = jax.nn.softmax(energy, axis=-1)
    o = jnp.einsum("bcj,bij->bci", v, attn)          # (B, C, N)
    out = params["gamma"].reshape(()) * o.reshape(B, C, W, H) + x
    return out, attn


def make_params(in_dim, key, scale=0.1):
    """Deterministic parameter init; shapes per Self_Attn.__init__ (1x1 convs)."""
    Dk = in_dim // 8
    ks = jax.random.split(key, 6)
    return {
        "wq": jax.random.normal(ks[0], (Dk, in_dim), jnp.float32) * scale,
        "bq": jax.random.normal(ks[1], (Dk,), jnp.float32) * scale,
        "wk": jax.random.normal(ks[2], (Dk, in_dim), jnp.float32) * scale,
        "bk": jax.random.normal(ks[3], (Dk,), jnp.float32) * scale,
        "wv": jax.random.normal(ks[4], (in_dim, in_dim), jnp.float32) * scale,
        "bv": jax.random.normal(ks[5], (in_dim,), jnp.float32) * scale,
        "gamma": jnp.zeros((1,), jnp.float32),       # matches nn.Parameter(torch.zeros(1))
    }


def _check(x, params, max_q_tile=None):
    B, C, W, H = x.shape
    N = W * H
    out, attn = self_attn_forward(x, params, max_q_tile=max_q_tile)
    out = jax.block_until_ready(out)
    attn = jax.block_until_ready(attn)
    assert out.shape == (B, C, W, H) and attn.shape == (B, N, N)

    out_ref, attn_ref = _reference_forward(x, params)
    attn_f32 = attn.astype(jnp.float32)
    # Tolerances loosened vs the f32 reference: bf16 MXU operands, bf16 x residual, bf16
    # attention output and the approximate EUP reciprocal in the softmax denominator.
    assert jnp.allclose(attn_f32, attn_ref, rtol=5e-2, atol=2e-2), \
        float(jnp.max(jnp.abs(attn_f32 - attn_ref)))
    assert jnp.allclose(out, out_ref, rtol=5e-2, atol=5e-2), \
        float(jnp.max(jnp.abs(out - out_ref)))
    # Attention rows should (approximately) sum to 1 over the valid keys.
    rowsum = jnp.sum(attn_f32, axis=-1)
    assert jnp.allclose(rowsum, jnp.ones_like(rowsum), rtol=2e-2, atol=2e-2)


if __name__ == "__main__":
    key = jax.random.PRNGKey(0)
    kx1, kx2, kp = jax.random.split(key, 3)

    C = 32                                            # in_dim=32 -> Dk=4
    params = make_params(C, kp)
    # gamma initializes to 0 (torch.zeros(1)), which would make out == x trivially; use a
    # trained-like nonzero value so the attention branch actually contributes to `out`.
    params["gamma"] = jnp.ones((1,), jnp.float32)

    # Primary case: N = 256 (lane-aligned). max_q_tile=128 forces 2 query tiles per batch so the
    # resident-K/V reuse path (t > 0) is exercised even at this small size.
    x1 = jax.random.normal(kx1, (2, C, 16, 16), jnp.float32)
    _check(x1, params, max_q_tile=128)

    # Secondary case: N = 100 -> padded to 128; exercises the key-column masking + output slicing.
    x2 = jax.random.normal(kx2, (1, C, 10, 10), jnp.float32)
    _check(x2, params)

    print("KERNEL_OK")
</pallas_src>

<mosaic_0001>
module attributes {stable_mosaic.version = 11 : i64} {
  func.func @kernel(%arg0: i32, %arg1: i32, %arg2: memref<1x32x256xbf16, #tpu.memory_space<vmem>>, %arg3: memref<4x32xbf16, #tpu.memory_space<vmem>>, %arg4: memref<4x1xf32, #tpu.memory_space<vmem>>, %arg5: memref<4x32xbf16, #tpu.memory_space<vmem>>, %arg6: memref<4x1xf32, #tpu.memory_space<vmem>>, %arg7: memref<32x32xbf16, #tpu.memory_space<vmem>>, %arg8: memref<32x1xf32, #tpu.memory_space<vmem>>, %arg9: memref<1xf32, #tpu.memory_space<smem>>, %arg10: memref<1x32x128xf32, #tpu.memory_space<vmem>>, %arg11: memref<1x128x256xbf16, #tpu.memory_space<vmem>>, %arg12: memref<4x256xbf16, #tpu.memory_space<vmem>>, %arg13: memref<32x256xbf16, #tpu.memory_space<vmem>>) attributes {dimension_semantics = [#tpu.dimension_semantics<parallel>, #tpu.dimension_semantics<arbitrary>], iteration_bounds = array<i64: 2, 2>, scalar_prefetch = 0 : i64, scratch_operands = 2 : i64, tpu.core_type = #tpu.core_type<tc>, window_params = [{transform_indices = @transform_0, window_bounds = array<i64: 1, 32, 256>}, {pipeline_mode = #tpu.pipeline_mode<synchronous>, transform_indices = @transform_1, window_bounds = array<i64: 4, 32>}, {pipeline_mode = #tpu.pipeline_mode<synchronous>, transform_indices = @transform_2, window_bounds = array<i64: 4, 1>}, {pipeline_mode = #tpu.pipeline_mode<synchronous>, transform_indices = @transform_3, window_bounds = array<i64: 4, 32>}, {pipeline_mode = #tpu.pipeline_mode<synchronous>, transform_indices = @transform_4, window_bounds = array<i64: 4, 1>}, {pipeline_mode = #tpu.pipeline_mode<synchronous>, transform_indices = @transform_5, window_bounds = array<i64: 32, 32>}, {pipeline_mode = #tpu.pipeline_mode<synchronous>, transform_indices = @transform_6, window_bounds = array<i64: 32, 1>}, {transform_indices = @transform_7, window_bounds = array<i64: 1>}, {transform_indices = @transform_8, window_bounds = array<i64: 1, 32, 128>}, {transform_indices = @transform_9, window_bounds = array<i64: 1, 128, 256>}]} {
    %c0_i32 = arith.constant 0 : i32
    %0 = arith.cmpi eq, %arg1, %c0_i32 : i32
    %1 = arith.extui %0 : i1 to i32
    %c0_i32_0 = arith.constant 0 : i32
    %2 = arith.cmpi ne, %1, %c0_i32_0 : i32
    scf.if %2 {
      %c0_23 = arith.constant 0 : index
      %c0_24 = arith.constant 0 : index
      %c0_25 = arith.constant 0 : index
      %46 = vector.load %arg2[%c0_23, %c0_24, %c0_25] : memref<1x32x256xbf16, #tpu.memory_space<vmem>>, vector<1x32x256xbf16>
      %47 = vector.shape_cast %46 : vector<1x32x256xbf16> to vector<32x256xbf16>
      %c0_26 = arith.constant 0 : index
      %c0_27 = arith.constant 0 : index
      %48 = vector.load %arg5[%c0_26, %c0_27] : memref<4x32xbf16, #tpu.memory_space<vmem>>, vector<4x32xbf16>
      %cst_28 = arith.constant dense<0.000000e+00> : vector<4x256xf32>
      %49 = tpu.matmul %48, %47, %cst_28 {dimension_numbers = #tpu.dot_dimension_numbers<[1], [0], [0], [1], [0, 0, 1, 1], [], []>} : vector<4x32xbf16>, vector<32x256xbf16>, vector<4x256xf32> -> vector<4x256xf32>
      %c0_29 = arith.constant 0 : index
      %c0_30 = arith.constant 0 : index
      %50 = vector.load %arg6[%c0_29, %c0_30] : memref<4x1xf32, #tpu.memory_space<vmem>>, vector<4x1xf32>
      %51 = vector.broadcast %50 : vector<4x1xf32> to vector<4x256xf32>
      %52 = arith.addf %49, %51 : vector<4x256xf32>
      %c0_31 = arith.constant 0 : index
      %c0_32 = arith.constant 0 : index
      %53 = vector.load %arg7[%c0_31, %c0_32] : memref<32x32xbf16, #tpu.memory_space<vmem>>, vector<32x32xbf16>
      %cst_33 = arith.constant dense<0.000000e+00> : vector<32x256xf32>
      %54 = tpu.matmul %53, %47, %cst_33 {dimension_numbers = #tpu.dot_dimension_numbers<[1], [0], [0], [1], [0, 0, 1, 1], [], []>} : vector<32x32xbf16>, vector<32x256xbf16>, vector<32x256xf32> -> vector<32x256xf32>
      %c0_34 = arith.constant 0 : index
      %c0_35 = arith.constant 0 : index
      %55 = vector.load %arg8[%c0_34, %c0_35] : memref<32x1xf32, #tpu.memory_space<vmem>>, vector<32x1xf32>
      %56 = vector.broadcast %55 : vector<32x1xf32> to vector<32x256xf32>
      %57 = arith.addf %54, %56 : vector<32x256xf32>
      %58 = arith.truncf %52 : vector<4x256xf32> to vector<4x256xbf16>
      %c0_36 = arith.constant 0 : index
      %c0_37 = arith.constant 0 : index
      %59 = vector.load %arg12[%c0_36, %c0_37] : memref<4x256xbf16, #tpu.memory_space<vmem>>, vector<4x256xbf16>
      tpu.vector_store %arg12[%c0_36, %c0_37], %58 {strides = array<i32>} : memref<4x256xbf16, #tpu.memory_space<vmem>>, vector<4x256xbf16>,
      %60 = arith.truncf %57 : vector<32x256xf32> to vector<32x256xbf16>
      %c0_38 = arith.constant 0 : index
      %c0_39 = arith.constant 0 : index
      %61 = vector.load %arg13[%c0_38, %c0_39] : memref<32x256xbf16, #tpu.memory_space<vmem>>, vector<32x256xbf16>
      tpu.vector_store %arg13[%c0_38, %c0_39], %60 {strides = array<i32>} : memref<32x256xbf16, #tpu.memory_space<vmem>>, vector<32x256xbf16>,
    } else {
    }
    %c128_i32 = arith.constant 128 : i32
    %3 = arith.muli %arg1, %c128_i32 : i32
    %4 = tpu.assume_multiple %3, 128 : i32
    %c0 = arith.constant 0 : index
    %c0_1 = arith.constant 0 : index
    %5 = arith.index_cast %4 : i32 to index
    %6 = vector.load %arg2[%c0, %c0_1, %5] : memref<1x32x256xbf16, #tpu.memory_space<vmem>>, vector<1x32x128xbf16>
    %7 = vector.shape_cast %6 : vector<1x32x128xbf16> to vector<32x128xbf16>
    %c0_2 = arith.constant 0 : index
    %c0_3 = arith.constant 0 : index
    %8 = vector.load %arg3[%c0_2, %c0_3] : memref<4x32xbf16, #tpu.memory_space<vmem>>, vector<4x32xbf16>
    %cst = arith.constant dense<0.000000e+00> : vector<4x128xf32>
    %9 = tpu.matmul %8, %7, %cst {dimension_numbers = #tpu.dot_dimension_numbers<[1], [0], [0], [1], [0, 0, 1, 1], [], []>} : vector<4x32xbf16>, vector<32x128xbf16>, vector<4x128xf32> -> vector<4x128xf32>
    %c0_4 = arith.constant 0 : index
    %c0_5 = arith.constant 0 : index
    %10 = vector.load %arg4[%c0_4, %c0_5] : memref<4x1xf32, #tpu.memory_space<vmem>>, vector<4x1xf32>
    %11 = vector.broadcast %10 : vector<4x1xf32> to vector<4x128xf32>
    %12 = arith.addf %9, %11 : vector<4x128xf32>
    %13 = arith.truncf %12 : vector<4x128xf32> to vector<4x128xbf16>
    %c0_6 = arith.constant 0 : index
    %c0_7 = arith.constant 0 : index
    %14 = vector.load %arg12[%c0_6, %c0_7] : memref<4x256xbf16, #tpu.memory_space<vmem>>, vector<4x256xbf16>
    %cst_8 = arith.constant dense<0.000000e+00> : vector<128x256xf32>
    %15 = tpu.matmul %13, %14, %cst_8 {dimension_numbers = #tpu.dot_dimension_numbers<[0], [0], [1], [1], [0, 1, 1, 1], [], []>} : vector<4x128xbf16>, vector<4x256xbf16>, vector<128x256xf32> -> vector<128x256xf32>
    %cst_9 = arith.constant dense<0xFF800000> : vector<128xf32>
    %16 = vector.multi_reduction <maximumf>, %15, %cst_9 [1] : vector<128x256xf32> to vector<128xf32>
    %17 = vector.shape_cast %16 : vector<128xf32> to vector<128x1xf32>
    %18 = vector.broadcast %17 : vector<128x1xf32> to vector<128x256xf32>
    %19 = arith.subf %15, %18 : vector<128x256xf32>
    %20 = math.exp %19 : vector<128x256xf32>
    %21 = arith.truncf %20 : vector<128x256xf32> to vector<128x256xbf16>
    %c0_10 = arith.constant 0 : index
    %c0_11 = arith.constant 0 : index
    %22 = vector.load %arg13[%c0_10, %c0_11] : memref<32x256xbf16, #tpu.memory_space<vmem>>, vector<32x256xbf16>
    %cst_12 = arith.constant dense<0.000000e+00> : vector<32x128xf32>
    %23 = tpu.matmul %22, %21, %cst_12 {dimension_numbers = #tpu.dot_dimension_numbers<[1], [1], [0], [0], [0, 0, 1, 0], [], []>} : vector<32x256xbf16>, vector<128x256xbf16>, vector<32x128xf32> -> vector<32x128xf32>
    %cst_13 = arith.constant 1.000000e+00 : bf16
    %24 = vector.broadcast %cst_13 : bf16 to vector<1x256xbf16>
    %cst_14 = arith.constant dense<0.000000e+00> : vector<1x128xf32>
    %25 = tpu.matmul %24, %21, %cst_14 {dimension_numbers = #tpu.dot_dimension_numbers<[1], [1], [0], [0], [0, 0, 1, 0], [], []>} : vector<1x256xbf16>, vector<128x256xbf16>, vector<1x128xf32> -> vector<1x128xf32>
    %26 = tpu.reciprocal %25 {approx = true} : vector<1x128xf32> -> vector<1x128xf32>
    %cst_15 = arith.constant dense<0.000000e+00> : vector<128xf32>
    %27 = vector.multi_reduction <add>, %20, %cst_15 [1] : vector<128x256xf32> to vector<128xf32>
    %28 = vector.shape_cast %27 : vector<128xf32> to vector<128x1xf32>
    %29 = tpu.reciprocal %28 {approx = true} : vector<128x1xf32> -> vector<128x1xf32>
    %30 = vector.broadcast %29 : vector<128x1xf32> to vector<128x256xf32>
    %31 = arith.mulf %20, %30 : vector<128x256xf32>
    %32 = arith.truncf %31 : vector<128x256xf32> to vector<128x256xbf16>
    %c0_16 = arith.constant 0 : index
    %c0_17 = arith.constant 0 : index
    %c0_18 = arith.constant 0 : index
    %33 = vector.load %arg11[%c0_16, %c0_17, %c0_18] : memref<1x128x256xbf16, #tpu.memory_space<vmem>>, vector<1x128x256xbf16>
    %34 = vector.shape_cast %33 : vector<1x128x256xbf16> to vector<128x256xbf16>
    %35 = vector.shape_cast %32 : vector<128x256xbf16> to vector<1x128x256xbf16>
    tpu.vector_store %arg11[%c0_16, %c0_17, %c0_18], %35 {strides = array<i32>} : memref<1x128x256xbf16, #tpu.memory_space<vmem>>, vector<1x128x256xbf16>,
    %c0_19 = arith.constant 0 : index
    %36 = memref.load %arg9[%c0_19] : memref<1xf32, #tpu.memory_space<smem>>
    %37 = vector.broadcast %26 : vector<1x128xf32> to vector<32x128xf32>
    %38 = arith.mulf %23, %37 : vector<32x128xf32>
    %39 = vector.broadcast %36 : f32 to vector<32x128xf32>
    %40 = arith.mulf %39, %38 : vector<32x128xf32>
    %41 = arith.extf %7 : vector<32x128xbf16> to vector<32x128xf32>
    %42 = arith.addf %40, %41 : vector<32x128xf32>
    %c0_20 = arith.constant 0 : index
    %c0_21 = arith.constant 0 : index
    %c0_22 = arith.constant 0 : index
    %43 = vector.load %arg10[%c0_20, %c0_21, %c0_22] : memref<1x32x128xf32, #tpu.memory_space<vmem>>, vector<1x32x128xf32>
    %44 = vector.shape_cast %43 : vector<1x32x128xf32> to vector<32x128xf32>
    %45 = vector.shape_cast %42 : vector<32x128xf32> to vector<1x32x128xf32>
    tpu.vector_store %arg10[%c0_20, %c0_21, %c0_22], %45 {strides = array<i32>} : memref<1x32x128xf32, #tpu.memory_space<vmem>>, vector<1x32x128xf32>,
    return
  }
  func.func @transform_0(%arg0: i32, %arg1: i32) -> (i32, i32, i32) {
    %c0_i32 = arith.constant 0 : i32
    %c0_i32_0 = arith.constant 0 : i32
    %c0_i32_1 = arith.constant 0 : i32
    return %arg0, %c0_i32, %c0_i32_0 : i32, i32, i32
  }
  func.func @transform_1(%arg0: i32, %arg1: i32) -> (i32, i32) {
    %c0_i32 = arith.constant 0 : i32
    %c0_i32_0 = arith.constant 0 : i32
    %c0_i32_1 = arith.constant 0 : i32
    return %c0_i32, %c0_i32_0 : i32, i32
  }
  func.func @transform_2(%arg0: i32, %arg1: i32) -> (i32, i32) {
    %c0_i32 = arith.constant 0 : i32
    %c0_i32_0 = arith.constant 0 : i32
    %c0_i32_1 = arith.constant 0 : i32
    return %c0_i32, %c0_i32_0 : i32, i32
  }
  func.func @transform_3(%arg0: i32, %arg1: i32) -> (i32, i32) {
    %c0_i32 = arith.constant 0 : i32
    %c0_i32_0 = arith.constant 0 : i32
    %c0_i32_1 = arith.constant 0 : i32
    return %c0_i32, %c0_i32_0 : i32, i32
  }
  func.func @transform_4(%arg0: i32, %arg1: i32) -> (i32, i32) {
    %c0_i32 = arith.constant 0 : i32
    %c0_i32_0 = arith.constant 0 : i32
    %c0_i32_1 = arith.constant 0 : i32
    return %c0_i32, %c0_i32_0 : i32, i32
  }
  func.func @transform_5(%arg0: i32, %arg1: i32) -> (i32, i32) {
    %c0_i32 = arith.constant 0 : i32
    %c0_i32_0 = arith.constant 0 : i32
    %c0_i32_1 = arith.constant 0 : i32
    return %c0_i32, %c0_i32_0 : i32, i32
  }
  func.func @transform_6(%arg0: i32, %arg1: i32) -> (i32, i32) {
    %c0_i32 = arith.constant 0 : i32
    %c0_i32_0 = arith.constant 0 : i32
    %c0_i32_1 = arith.constant 0 : i32
    return %c0_i32, %c0_i32_0 : i32, i32
  }
  func.func @transform_7(%arg0: i32, %arg1: i32) -> i32 {
    %c0_i32 = arith.constant 0 : i32
    %c0_i32_0 = arith.constant 0 : i32
    return %c0_i32 : i32
  }
  func.func @transform_8(%arg0: i32, %arg1: i32) -> (i32, i32, i32) {
    %c0_i32 = arith.constant 0 : i32
    %c0_i32_0 = arith.constant 0 : i32
    return %arg0, %c0_i32, %arg1 : i32, i32, i32
  }
  func.func @transform_9(%arg0: i32, %arg1: i32) -> (i32, i32, i32) {
    %c0_i32 = arith.constant 0 : i32
    %c0_i32_0 = arith.constant 0 : i32
    return %arg0, %arg1, %c0_i32 : i32, i32, i32
  }
}

</mosaic_0001>

<llo_original>
// kernel: tpu_custom_call.1
$region0: #{tpu_custom_call.1}
  #allocation0 [shape = 'u32[]', space=smem, size = 0x4, offset = 0x4, fixed_abs, tag = 'smem constant byte address 0x4 - core index']
  #allocation1 [shape = 'u32[144,128]{1,0:T(1,128)}', space=vmem, size = 0x12000, scoped, tag = 'internal scratch']
  #allocation2 [shape = 'bf16[4,256]{1,0:T(4,128)(2,1)}', space=vmem, size = 0x800, scoped, tag = 'scratch operand']
  #allocation3 [shape = 'bf16[32,256]{1,0:T(8,128)(2,1)}', space=vmem, size = 0x4000, scoped, tag = 'scratch operand']
  #allocation4 [shape = 'f32[1]{0:T(128)S(6)}', space=smem, size = 0x200, scoped, tag = 'scoped memory for tpu_custom_call.1']
  %s0 = inlined_call_operand.hbm [shape: bf16[2,32,256], index: 0, kind: input, shape index: {}]
  %s1 = inlined_call_operand.vmem [shape: bf16[4,32], index: 1, kind: input, shape index: {}]
  %s2 = inlined_call_operand.vmem [shape: f32[4,1], index: 2, kind: input, shape index: {}]
  %s3 = inlined_call_operand.vmem [shape: bf16[4,32], index: 3, kind: input, shape index: {}]
  %s4 = inlined_call_operand.vmem [shape: f32[4,1], index: 4, kind: input, shape index: {}]
  %s5 = inlined_call_operand.vmem [shape: bf16[32,32], index: 5, kind: input, shape index: {}]
  %s6 = inlined_call_operand.vmem [shape: f32[32,1], index: 6, kind: input, shape index: {}]
  %s7 = inlined_call_operand.<no memory space> [shape: f32[1], index: 7, kind: input, shape index: {}]
  %s8 = inlined_call_operand.hbm [shape: f32[2,32,256], index: 8, kind: output, shape index: {0}]
  %s9 = inlined_call_operand.hbm [shape: bf16[2,256,256], index: 9, kind: output, shape index: {1}]
  %10 = xla_tuple %s8, %s9
  %s11 = sld [smem:[#allocation0]]
  $region81: #{tpu_custom_call.1} parent=0
    _
  %s13 = ssub.s32 1, %s11
  %s14 = scalar_select 0, %s13, %s11
  %15 = sst [smem:[#allocation4]] %s7
  $region1: #{tpu_custom_call.1} parent=0
    #allocation5 [shape = 'u8[32768]{0}', space=vmem, size = 0x8000, scoped, tag = 'input window, operand 0']
    #allocation6 [shape = 's32[2]{0}', space=sflag, size = 0x8, scoped, tag = 'scoped memory for tpu_custom_call.1']
    #allocation7 [shape = 's32[2]{0}', space=sflag, size = 0x8, scoped, tag = 'scoped memory for tpu_custom_call.1']
    #allocation8 [shape = 'u8[32768]{0}', space=vmem, size = 0x8000, scoped, tag = 'output window, operand 0']
    #allocation9 [shape = 'u8[131072]{0}', space=vmem, size = 0x20000, scoped, tag = 'output window, operand 1']
    #allocation10 [shape = 's32[2]{0}', space=sflag, size = 0x8, scoped, tag = 'scoped memory for tpu_custom_call.1']
    %16 = vsyncpa [#allocation6], 0
    %s17 = scalar_lea.sflag [#allocation6], 1
    %18 = vsyncpa %s17, 0
    %19 = vsyncpa [#allocation7], 0
    %s20 = scalar_lea.sflag [#allocation7], 1
    %21 = vsyncpa %s20, 0
    %22 = vsyncpa [#allocation10], 0
    %s23 = scalar_lea.sflag [#allocation10], 1
    %24 = vsyncpa %s23, 0
    loop: start=0, step=1, limit=6
    $region2: #{tpu_custom_call.1} parent=1 // loop_pre_header
      _
    $region3: #{tpu_custom_call.1} parent=1 // loop_header
      %s26 = sphi 0, %s30
      %p27 = scmp.ge.s32.totalorder %s26, 6
      %s33 = sphi 0, %s45
      %s34 = sphi 0, %s41
      %s35 = sphi 0, %s33
      %s36 = sphi 0, %s34
      %s37 = sphi 0, %s35
      %s38 = sphi 0, %s36
      %s48 = sphi 0, %s50
      %s51 = sphi 0, %s48
      %s52 = sphi 0, %s51
      %s68 = sphi 0, %s52
      %s72 = sphi 0, %s72
      %s74 = sphi 0, %s72
      %s75 = sphi 0, %s74
      %s89 = sphi 0, %s75
      %s93 = sphi 0, %s93
      %s95 = sphi 0, %s93
      %s96 = sphi 0, %s95
      %s110 = sphi 0, %s96
      %s114 = sphi 0, %s114
      %s116 = sphi 0, %s114
      %s117 = sphi 0, %s116
      %s131 = sphi 0, %s117
      %s135 = sphi 0, %s135
      %s137 = sphi 0, %s135
      %s138 = sphi 0, %s137
      %s152 = sphi 0, %s138
      %s156 = sphi 0, %s156
      %s158 = sphi 0, %s156
      %s159 = sphi 0, %s158
      %s173 = sphi 0, %s159
      %s177 = sphi 0, %s177
      %s179 = sphi 0, %s177
      %s180 = sphi 0, %s179
      %s194 = sphi 0, %s180
      %s198 = sphi 0, %s198
      %s200 = sphi 0, %s198
      %s201 = sphi 0, %s200
      %s215 = sphi 0, %s201
      %s223 = sphi 0, %s225
      %s226 = sphi 0, %s223
      %s227 = sphi 0, %s226
      %s243 = sphi 0, %s227
      %s251 = sphi 0, %s253
      %s254 = sphi 0, %s251
      %s255 = sphi 0, %s254
      %s271 = sphi 0, %s255
    $region4: #{tpu_custom_call.1} parent=1 // loop_header_branch
      %29 = sbr.rel (%p27) target = $region8
    $region5: #{tpu_custom_call.1} parent=1 // loop_body
      %s31 = ssub.s32 %s26, 1
      %s32 = ssub.s32 %s26, 2
      %s39 = sadd.s32 1, %s34
      %p40 = scmp.ge.s32.totalorder %s39, 2
      %s41 = scalar_select %p40, 0, %s39
      %s42 = sadd.s32 1, %s33
      %s43 = scalar_select %p40, %s42, %s33
      %p44 = scmp.ge.s32.totalorder %s43, 2
      %s45 = scalar_select %p44, 0, %s43
      %s46 = ssub.s32 %s33, %s45
      %p47 = scmp.eq.s32.totalorder %s46, 0
      %s49 = sadd.s32 %s48, 1
      %s50 = scalar_select %p47, %s48, %s49
      %p53 = pneg %p47
      %p54 = scmp.eq.s32.totalorder %s26, 3
      %p55 = por %p53, %p54
      %p56 = scmp.ne.s32.totalorder %s48, %s51
      %p57 = scmp.eq.s32.totalorder %s26, 0
      %p58 = por %p56, %p57
      %p59 = scmp.ne.s32.totalorder %s48, %s51
      %p60 = scmp.eq.s32.totalorder %s31, 3
      %p61 = por %p59, %p60
      %p62 = scmp.ne.s32.totalorder %s51, %s52
      %p63 = scmp.eq.s32.totalorder %s31, 0
      %p64 = por %p62, %p63
      %p65 = scmp.ne.s32.totalorder %s51, %s52
      %p66 = scmp.eq.s32.totalorder %s32, 3
      %p67 = por %p65, %p66
      %p69 = scmp.ne.s32.totalorder %s52, %s68
      %p70 = scmp.eq.s32.totalorder %s32, 0
      %p71 = por %p69, %p70
      %s73 = sadd.s32 %s72, 1
      %p76 = scmp.eq.s32.totalorder %s26, 3
      %p77 = scmp.ne.s32.totalorder %s72, %s74
      %p78 = scmp.eq.s32.totalorder %s26, 0
      %p79 = por %p77, %p78
      %p80 = scmp.ne.s32.totalorder %s72, %s74
      %p81 = scmp.eq.s32.totalorder %s31, 3
      %p82 = por %p80, %p81
      %p83 = scmp.ne.s32.totalorder %s74, %s75
      %p84 = scmp.eq.s32.totalorder %s31, 0
      %p85 = por %p83, %p84
      %p86 = scmp.ne.s32.totalorder %s74, %s75
      %p87 = scmp.eq.s32.totalorder %s32, 3
      %p88 = por %p86, %p87
      %p90 = scmp.ne.s32.totalorder %s75, %s89
      %p91 = scmp.eq.s32.totalorder %s32, 0
      %p92 = por %p90, %p91
      %s94 = sadd.s32 %s93, 1
      %p97 = scmp.eq.s32.totalorder %s26, 3
      %p98 = scmp.ne.s32.totalorder %s93, %s95
      %p99 = scmp.eq.s32.totalorder %s26, 0
      %p100 = por %p98, %p99
      %p101 = scmp.ne.s32.totalorder %s93, %s95
      %p102 = scmp.eq.s32.totalorder %s31, 3
      %p103 = por %p101, %p102
      %p104 = scmp.ne.s32.totalorder %s95, %s96
      %p105 = scmp.eq.s32.totalorder %s31, 0
      %p106 = por %p104, %p105
      %p107 = scmp.ne.s32.totalorder %s95, %s96
      %p108 = scmp.eq.s32.totalorder %s32, 3
      %p109 = por %p107, %p108
      %p111 = scmp.ne.s32.totalorder %s96, %s110
      %p112 = scmp.eq.s32.totalorder %s32, 0
      %p113 = por %p111, %p112
      %s115 = sadd.s32 %s114, 1
      %p118 = scmp.eq.s32.totalorder %s26, 3
      %p119 = scmp.ne.s32.totalorder %s114, %s116
      %p120 = scmp.eq.s32.totalorder %s26, 0
      %p121 = por %p119, %p120
      %p122 = scmp.ne.s32.totalorder %s114, %s116
      %p123 = scmp.eq.s32.totalorder %s31, 3
      %p124 = por %p122, %p123
      %p125 = scmp.ne.s32.totalorder %s116, %s117
      %p126 = scmp.eq.s32.totalorder %s31, 0
      %p127 = por %p125, %p126
      %p128 = scmp.ne.s32.totalorder %s116, %s117
      %p129 = scmp.eq.s32.totalorder %s32, 3
      %p130 = por %p128, %p129
      %p132 = scmp.ne.s32.totalorder %s117, %s131
      %p133 = scmp.eq.s32.totalorder %s32, 0
      %p134 = por %p132, %p133
      %s136 = sadd.s32 %s135, 1
      %p139 = scmp.eq.s32.totalorder %s26, 3
      %p140 = scmp.ne.s32.totalorder %s135, %s137
      %p141 = scmp.eq.s32.totalorder %s26, 0
      %p142 = por %p140, %p141
      %p143 = scmp.ne.s32.totalorder %s135, %s137
      %p144 = scmp.eq.s32.totalorder %s31, 3
      %p145 = por %p143, %p144
      %p146 = scmp.ne.s32.totalorder %s137, %s138
      %p147 = scmp.eq.s32.totalorder %s31, 0
      %p148 = por %p146, %p147
      %p149 = scmp.ne.s32.totalorder %s137, %s138
      %p150 = scmp.eq.s32.totalorder %s32, 3
      %p151 = por %p149, %p150
      %p153 = scmp.ne.s32.totalorder %s138, %s152
      %p154 = scmp.eq.s32.totalorder %s32, 0
      %p155 = por %p153, %p154
      %s157 = sadd.s32 %s156, 1
      %p160 = scmp.eq.s32.totalorder %s26, 3
      %p161 = scmp.ne.s32.totalorder %s156, %s158
      %p162 = scmp.eq.s32.totalorder %s26, 0
      %p163 = por %p161, %p162
      %p164 = scmp.ne.s32.totalorder %s156, %s158
      %p165 = scmp.eq.s32.totalorder %s31, 3
      %p166 = por %p164, %p165
      %p167 = scmp.ne.s32.totalorder %s158, %s159
      %p168 = scmp.eq.s32.totalorder %s31, 0
      %p169 = por %p167, %p168
      %p170 = scmp.ne.s32.totalorder %s158, %s159
      %p171 = scmp.eq.s32.totalorder %s32, 3
      %p172 = por %p170, %p171
      %p174 = scmp.ne.s32.totalorder %s159, %s173
      %p175 = scmp.eq.s32.totalorder %s32, 0
      %p176 = por %p174, %p175
      %s178 = sadd.s32 %s177, 1
      %p181 = scmp.eq.s32.totalorder %s26, 3
      %p182 = scmp.ne.s32.totalorder %s177, %s179
      %p183 = scmp.eq.s32.totalorder %s26, 0
      %p184 = por %p182, %p183
      %p185 = scmp.ne.s32.totalorder %s177, %s179
      %p186 = scmp.eq.s32.totalorder %s31, 3
      %p187 = por %p185, %p186
      %p188 = scmp.ne.s32.totalorder %s179, %s180
      %p189 = scmp.eq.s32.totalorder %s31, 0
      %p190 = por %p188, %p189
      %p191 = scmp.ne.s32.totalorder %s179, %s180
      %p192 = scmp.eq.s32.totalorder %s32, 3
      %p193 = por %p191, %p192
      %p195 = scmp.ne.s32.totalorder %s180, %s194
      %p196 = scmp.eq.s32.totalorder %s32, 0
      %p197 = por %p195, %p196
      %s199 = sadd.s32 %s198, 1
      %p202 = scmp.eq.s32.totalorder %s26, 3
      %p203 = scmp.ne.s32.totalorder %s198, %s200
      %p204 = scmp.eq.s32.totalorder %s26, 0
      %p205 = por %p203, %p204
      %p206 = scmp.ne.s32.totalorder %s198, %s200
      %p207 = scmp.eq.s32.totalorder %s31, 3
      %p208 = por %p206, %p207
      %p209 = scmp.ne.s32.totalorder %s200, %s201
      %p210 = scmp.eq.s32.totalorder %s31, 0
      %p211 = por %p209, %p210
      %p212 = scmp.ne.s32.totalorder %s200, %s201
      %p213 = scmp.eq.s32.totalorder %s32, 3
      %p214 = por %p212, %p213
      %p216 = scmp.ne.s32.totalorder %s201, %s215
      %p217 = scmp.eq.s32.totalorder %s32, 0
      %p218 = por %p216, %p217
      %s219 = ssub.s32 %s33, %s45
      %s220 = ssub.s32 %s34, %s41
      %s221 = sor.u32 %s219, %s220
      %p222 = scmp.eq.s32.totalorder %s221, 0
      %s224 = sadd.s32 %s223, 1
      %s225 = scalar_select %p222, %s223, %s224
      %p228 = pneg %p222
      %p229 = scmp.eq.s32.totalorder %s26, 3
      %p230 = por %p228, %p229
      %p231 = scmp.ne.s32.totalorder %s223, %s226
      %p232 = scmp.eq.s32.totalorder %s26, 0
      %p233 = por %p231, %p232
      %p234 = scmp.ne.s32.totalorder %s223, %s226
      %p235 = scmp.eq.s32.totalorder %s31, 3
      %p236 = por %p234, %p235
      %p237 = scmp.ne.s32.totalorder %s226, %s227
      %p238 = scmp.eq.s32.totalorder %s31, 0
      %p239 = por %p237, %p238
      %p240 = scmp.ne.s32.totalorder %s226, %s227
      %p241 = scmp.eq.s32.totalorder %s32, 3
      %p242 = por %p240, %p241
      %p244 = scmp.ne.s32.totalorder %s227, %s243
      %p245 = scmp.eq.s32.totalorder %s32, 0
      %p246 = por %p244, %p245
      %s247 = ssub.s32 %s33, %s45
      %s248 = ssub.s32 %s34, %s41
      %s249 = sor.u32 %s247, %s248
      %p250 = scmp.eq.s32.totalorder %s249, 0
      %s252 = sadd.s32 %s251, 1
      %s253 = scalar_select %p250, %s251, %s252
      %p256 = pneg %p250
      %p257 = scmp.eq.s32.totalorder %s26, 3
      %p258 = por %p256, %p257
      %p259 = scmp.ne.s32.totalorder %s251, %s254
      %p260 = scmp.eq.s32.totalorder %s26, 0
      %p261 = por %p259, %p260
      %p262 = scmp.ne.s32.totalorder %s251, %s254
      %p263 = scmp.eq.s32.totalorder %s31, 3
      %p264 = por %p262, %p263
      %p265 = scmp.ne.s32.totalorder %s254, %s255
      %p266 = scmp.eq.s32.totalorder %s31, 0
      %p267 = por %p265, %p266
      %p268 = scmp.ne.s32.totalorder %s254, %s255
      %p269 = scmp.eq.s32.totalorder %s32, 3
      %p270 = por %p268, %p269
      %p272 = scmp.ne.s32.totalorder %s255, %s271
      %p273 = scmp.eq.s32.totalorder %s32, 0
      %p274 = por %p272, %p273
      %p275 = scmp.le.s32.totalorder 1, %s26
      %p276 = scmp.lt.s32.totalorder %s26, 5
      %p277 = pnand %p275, %p276
      %p278 = pneg %p277
      // Predicated region
      $region9: #{tpu_custom_call.1} parent=5 // pred_check
        _
      $region10: #{tpu_custom_call.1} parent=5 // pred_check_branch
        %280 = sbr.rel (%p277) target = $region12
      $region11: #{tpu_custom_call.1} parent=5 // pred_region
        %s281 = ssub.s32 %s26, 1
        // Predicated region
        $region13: #{tpu_custom_call.1} parent=11 // pred_check
          %p282 = pneg %p85
        $region14: #{tpu_custom_call.1} parent=11 // pred_check_branch
          %284 = sbr.rel (%p282) target = $region16
        $region15: #{tpu_custom_call.1} parent=11 // pred_region
          _
        $region16: #{tpu_custom_call.1} parent=11 // pred_fallthru
          _
        // Predicated region
        $region17: #{tpu_custom_call.1} parent=11 // pred_check
          %p285 = pneg %p106
        $region18: #{tpu_custom_call.1} parent=11 // pred_check_branch
          %287 = sbr.rel (%p285) target = $region20
        $region19: #{tpu_custom_call.1} parent=11 // pred_region
          _
        $region20: #{tpu_custom_call.1} parent=11 // pred_fallthru
          _
        // Predicated region
        $region21: #{tpu_custom_call.1} parent=11 // pred_check
          %p288 = pneg %p127
        $region22: #{tpu_custom_call.1} parent=11 // pred_check_branch
          %290 = sbr.rel (%p288) target = $region24
        $region23: #{tpu_custom_call.1} parent=11 // pred_region
          _
        $region24: #{tpu_custom_call.1} parent=11 // pred_fallthru
          _
        // Predicated region
        $region25: #{tpu_custom_call.1} parent=11 // pred_check
          %p291 = pneg %p148
        $region26: #{tpu_custom_call.1} parent=11 // pred_check_branch
          %293 = sbr.rel (%p291) target = $region28
        $region27: #{tpu_custom_call.1} parent=11 // pred_region
          _
        $region28: #{tpu_custom_call.1} parent=11 // pred_fallthru
          _
        // Predicated region
        $region29: #{tpu_custom_call.1} parent=11 // pred_check
          %p294 = pneg %p169
        $region30: #{tpu_custom_call.1} parent=11 // pred_check_branch
          %296 = sbr.rel (%p294) target = $region32
        $region31: #{tpu_custom_call.1} parent=11 // pred_region
          _
        $region32: #{tpu_custom_call.1} parent=11 // pred_fallthru
          _
        // Predicated region
        $region33: #{tpu_custom_call.1} parent=11 // pred_check
          %p297 = pneg %p190
        $region34: #{tpu_custom_call.1} parent=11 // pred_check_branch
          %299 = sbr.rel (%p297) target = $region36
        $region35: #{tpu_custom_call.1} parent=11 // pred_region
          _
        $region36: #{tpu_custom_call.1} parent=11 // pred_fallthru
          _
        // Predicated region
        $region37: #{tpu_custom_call.1} parent=11 // pred_check
          %p300 = pneg %p211
        $region38: #{tpu_custom_call.1} parent=11 // pred_check_branch
          %302 = sbr.rel (%p300) target = $region40
        $region39: #{tpu_custom_call.1} parent=11 // pred_region
          _
        $region40: #{tpu_custom_call.1} parent=11 // pred_fallthru
          _
      $region12: #{tpu_custom_call.1} parent=5 // pred_fallthru
        _
      %p303 = scmp.lt.s32.totalorder %s26, 4
      // Predicated region
      $region41: #{tpu_custom_call.1} parent=5 // pred_check
        %p304 = pneg %p303
      $region42: #{tpu_custom_call.1} parent=5 // pred_check_branch
        %306 = sbr.rel (%p304) target = $region44
      $region43: #{tpu_custom_call.1} parent=5 // pred_region
        // Predicated region
        $region45: #{tpu_custom_call.1} parent=43 // pred_check
          %p307 = pneg %p58
        $region46: #{tpu_custom_call.1} parent=43 // pred_check_branch
          %309 = sbr.rel (%p307) target = $region48
        $region47: #{tpu_custom_call.1} parent=43 // pred_region
          %s310 = sand.u32 %s48, 1
          %s311 = scalar_lea.sflag [#allocation6], %s310
          %s312 = sand.u32 %s48, 1
          %s313 = smul.addr %s312, 32
          %s314 = scalar_lea.vmem [#allocation5], %s313
          %s316 = ssub.s32 512, 512
          %317 = vsyncadd %s311, %s316
          %s318 = smul.addr %s33, 8
          %s319 = smul.addr %s318, 64
          %s320 = scalar_lea.hbm %s0, %s319
          %s321 = sshll.u32 %s314, 4
          %s322 = int_to_ptr.vmem [resolvable:$true] %s321
          %327 = dma.hbm_to_vmem [thread:$0]  %s320, 512, %s322, %s311, 128, 128, 8
        $region48: #{tpu_custom_call.1} parent=43 // pred_fallthru
          _
      $region44: #{tpu_custom_call.1} parent=5 // pred_fallthru
        _
      %p328 = scmp.le.s32.totalorder 1, %s26
      %p329 = scmp.lt.s32.totalorder %s26, 5
      %p330 = pnand %p328, %p329
      %p331 = pneg %p330
      // Predicated region
      $region49: #{tpu_custom_call.1} parent=5 // pred_check
        _
      $region50: #{tpu_custom_call.1} parent=5 // pred_check_branch
        %333 = sbr.rel (%p330) target = $region52
      $region51: #{tpu_custom_call.1} parent=5 // pred_region
        %s334 = ssub.s32 %s26, 1
        %s335 = sand.u32 %s51, 1
        %s336 = scalar_lea.sflag [#allocation6], %s335
        %s337 = sand.u32 %s51, 1
        %s338 = smul.addr %s337, 32
        %s339 = scalar_lea.vmem [#allocation5], %s338
        // Predicated region
        $region53: #{tpu_custom_call.1} parent=51 // pred_check
          %p340 = pneg %p64
        $region54: #{tpu_custom_call.1} parent=51 // pred_check_branch
          %342 = sbr.rel (%p340) target = $region56
        $region55: #{tpu_custom_call.1} parent=51 // pred_region
          %343 = dma.done %s336, 512
        $region56: #{tpu_custom_call.1} parent=51 // pred_fallthru
          _
        %s344 = sand.u32 %s51, 1
        %s345 = scalar_lea.sflag [#allocation6], %s344
        %s346 = sand.u32 %s51, 1
        %s347 = smul.addr %s346, 32
        %s348 = scalar_lea.vmem [#allocation5], %s347
        %p349 = pneg %p64
        %p350 = pneg %p61
        %p351 = pneg %p85
        %p352 = pneg %p82
        %p353 = pneg %p106
        %p354 = pneg %p103
        %p355 = pneg %p127
        %p356 = pneg %p124
        %p357 = pneg %p148
        %p358 = pneg %p145
        %p359 = pneg %p169
        %p360 = pneg %p166
        %p361 = pneg %p190
        %p362 = pneg %p187
        %p363 = pneg %p211
        %p364 = pneg %p208
        %p365 = pneg %p239
        %p366 = pneg %p236
        %s367 = sand.u32 %s226, 1
        %s368 = scalar_lea.sflag [#allocation7], %s367
        %s369 = sand.u32 %s226, 1
        %s370 = smul.addr %s369, 32
        %s371 = scalar_lea.vmem [#allocation8], %s370
        %p372 = pneg %p267
        %p373 = pneg %p264
        %s374 = sand.u32 %s254, 1
        %s375 = scalar_lea.sflag [#allocation10], %s374
        %s376 = sand.u32 %s254, 1
        %s377 = smul.addr %s376, 128
        %s378 = scalar_lea.vmem [#allocation9], %s377
        %s379 = smul.u32 16, %s36
        %p382 = scmp.eq.s32.totalorder %s36, 0
        // Predicated region
        $region57: #{tpu_custom_call.1} parent=51 // pred_check
          %p383 = pneg %p382
        $region58: #{tpu_custom_call.1} parent=51 // pred_check_branch
          %385 = sbr.rel (%p383) target = $region60
        $region59: #{tpu_custom_call.1} parent=51 // pred_region
          %v386 = vld [vmem:[%s339] sm:$0xff]
          %v387 = vld [vmem:[%s339 + $0x8] sm:$0xff]
          %v388 = vld [vmem:[%s339 + $0x10] sm:$0xff]
          %v389 = vld [vmem:[%s339 + $0x18] sm:$0xff]
          %v390 = vld [vmem:[%s3] sm:$0x3]
          %v391 = vld [vmem:[%s4] sm:$0xf]
          %393 = vset.pattern.permute.xlu0 0
          %394 = vperm.xlu0 %393, %v391
          %v395 = vpop.permute.xlu0 %394
          %v401 = vunpack.c.l.b16 %v386
          %v402 = vunpack.c.h.b16 %v386
          %v403 = vunpack.c.l.b16 %v387
          %v404 = vunpack.c.h.b16 %v387
          %v405 = vunpack.c.l.b16 %v388
          %v406 = vunpack.c.h.b16 %v388
          %v407 = vunpack.c.l.b16 %v389
          %v408 = vunpack.c.h.b16 %v389
          %v409 = vpack.c.b16 %v403, %v401
          %v410 = vpack.c.b16 %v404, %v402
          %v411 = vpack.c.b16 %v407, %v405
          %v412 = vpack.c.b16 %v408, %v406
          %vm417 = vcmask 261120
          %v419 = vsel %vm417, %v390, 0
          %421 = vmatprep.subr.bf16.mxu0 0
          %422 = vmatpush1.bf16.msra.mxu0 0
          %423 = vmatprep.subr.bf16.mxu0 0
          %424 = vmatpush1.bf16.msra.mxu0 0
          %425 = vmatprep.subr.bf16.mxu0 0
          %426 = vmatpush1.bf16.msra.mxu0 0
          %427 = vmatprep.subr.bf16.mxu0 0
          %428 = vmatpush1.bf16.msra.mxu0 0
          %429 = vmatprep.subr.bf16.mxu0 0
          %430 = vmatpush1.bf16.msra.mxu0 0
          %431 = vmatprep.subr.bf16.mxu0 0
          %432 = vmatpush1.bf16.msra.mxu0 0
          %433 = vmatprep.subr.bf16.mxu0 %v412
          %434 = vmatpush1.bf16.msra.mxu0 %v411
          %435 = vmatprep.subr.bf16.mxu0 %v410
          %436 = vmatpush1.bf16.msra.mxu0 %v409
          %437 = vmatprep.subr.bf16.mxu0 0
          %438 = vmatpush2.bf16.msra.mxu0 0
          %439 = vmatprep.subr.bf16.mxu0 0
          %440 = vmatpush2.bf16.msra.mxu0 0
          %441 = vmatprep.subr.bf16.mxu0 0
          %442 = vmatpush2.bf16.msra.mxu0 0
          %443 = vmatprep.subr.bf16.mxu0 0
          %444 = vmatpush2.bf16.msra.mxu0 0
          %445 = vmatprep.subr.bf16.mxu0 0
          %446 = vmatpush2.bf16.msra.mxu0 0
          %447 = vmatprep.subr.bf16.mxu0 0
          %448 = vmatpush2.bf16.msra.mxu0 0
          %449 = vmatprep.subr.bf16.mxu0 0
          %450 = vmatpush2.bf16.msra.mxu0 0
          %451 = vmatprep.subr.bf16.mxu0 0
          %452 = vmatpush2.bf16.msra.mxu0 0
          %453 = vmatprep.mubr.bf16.mxu0 0
          %454 = vmatmul.mubr.bf16.gmra.mxu0 %v419
          %v455 = vpop.f32.mrf.mxu0
          %v456 = vadd.f32 %v395, %v455
          %v457 = vpop.f32.mrf.mxu0
          %v458 = vadd.f32 %v395, %v457
          %v459 = vpop.f32.mrf.mxu0
          %v460 = vpop.f32.mrf.mxu0
          %461 = vdwg.mxu0
          %v462 = vld [vmem:[%s5] sm:$0xf]
          %v463 = vld [vmem:[%s5 + $0x4] sm:$0xf]
          %v464 = vld [vmem:[%s5 + $0x8] sm:$0xf]
          %v465 = vld [vmem:[%s5 + $0xc] sm:$0xf]
          %v466 = vld [vmem:[%s6] sm:$0xff]
          %v467 = vld [vmem:[%s6 + $0x8] sm:$0xff]
          %v468 = vld [vmem:[%s6 + $0x10] sm:$0xff]
          %v469 = vld [vmem:[%s6 + $0x18] sm:$0xff]
          %471 = vset.pattern.permute.xlu0 0
          %472 = vperm.xlu0 %471, %v466
          %v473 = vpop.permute.xlu0 %472
          %476 = vset.pattern.permute.xlu0 0
          %477 = vperm.xlu0 %476, %v467
          %v478 = vpop.permute.xlu0 %477
          %481 = vset.pattern.permute.xlu0 0
          %482 = vperm.xlu0 %481, %v468
          %v483 = vpop.permute.xlu0 %482
          %486 = vset.pattern.permute.xlu0 0
          %487 = vperm.xlu0 %486, %v469
          %v488 = vpop.permute.xlu0 %487
          %v494 = vunpack.c.l.b16 %v462
          %v495 = vunpack.c.l.b16 %v463
          %v496 = vunpack.c.l.b16 %v464
          %v497 = vunpack.c.l.b16 %v465
          %v498 = vpack.c.b16 %v495, %v494
          %v499 = vpack.c.b16 %v497, %v496
          %v501 = vsel %vm417, %v498, 0
          %v504 = vsel %vm417, %v499, 0
          %506 = vmatprep.subr.bf16.mxu0 0
          %507 = vmatpush1.bf16.msra.mxu0 0
          %508 = vmatprep.subr.bf16.mxu0 0
          %509 = vmatpush1.bf16.msra.mxu0 0
          %510 = vmatprep.subr.bf16.mxu0 0
          %511 = vmatpush1.bf16.msra.mxu0 0
          %512 = vmatprep.subr.bf16.mxu0 0
          %513 = vmatpush1.bf16.msra.mxu0 0
          %514 = vmatprep.subr.bf16.mxu0 0
          %515 = vmatpush1.bf16.msra.mxu0 0
          %516 = vmatprep.subr.bf16.mxu0 0
          %517 = vmatpush1.bf16.msra.mxu0 0
          %518 = vmatprep.subr.bf16.mxu0 %v412
          %519 = vmatpush1.bf16.msra.mxu0 %v411
          %520 = vmatprep.subr.bf16.mxu0 %v410
          %521 = vmatpush1.bf16.msra.mxu0 %v409
          %522 = vmatprep.subr.bf16.mxu0 0
          %523 = vmatpush2.bf16.msra.mxu0 0
          %524 = vmatprep.subr.bf16.mxu0 0
          %525 = vmatpush2.bf16.msra.mxu0 0
          %526 = vmatprep.subr.bf16.mxu0 0
          %527 = vmatpush2.bf16.msra.mxu0 0
          %528 = vmatprep.subr.bf16.mxu0 0
          %529 = vmatpush2.bf16.msra.mxu0 0
          %530 = vmatprep.subr.bf16.mxu0 0
          %531 = vmatpush2.bf16.msra.mxu0 0
          %532 = vmatprep.subr.bf16.mxu0 0
          %533 = vmatpush2.bf16.msra.mxu0 0
          %534 = vmatprep.subr.bf16.mxu0 0
          %535 = vmatpush2.bf16.msra.mxu0 0
          %536 = vmatprep.subr.bf16.mxu0 0
          %537 = vmatpush2.bf16.msra.mxu0 0
          %538 = vmatprep.mubr.bf16.mxu0 0
          %539 = vmatmul.mubr.bf16.gmra.mxu0 %v501
          %v540 = vpop.f32.mrf.mxu0
          %v541 = vadd.f32 %v473, %v540
          %v542 = vpop.f32.mrf.mxu0
          %v543 = vadd.f32 %v473, %v542
          %v544 = vpop.f32.mrf.mxu0
          %v545 = vadd.f32 %v478, %v544
          %v546 = vpop.f32.mrf.mxu0
          %v547 = vadd.f32 %v478, %v546
          %548 = vmatprep.mubr.bf16.mxu0 0
          %549 = vmatmul.mubr.bf16.gmra.mxu0 %v504
          %v550 = vpop.f32.mrf.mxu0
          %v551 = vadd.f32 %v483, %v550
          %v552 = vpop.f32.mrf.mxu0
          %v553 = vadd.f32 %v483, %v552
          %v554 = vpop.f32.mrf.mxu0
          %v555 = vadd.f32 %v488, %v554
          %v556 = vpop.f32.mrf.mxu0
          %v557 = vadd.f32 %v488, %v556
          %558 = vdwg.mxu0
          %v559 = vpack.c.bf16 %v456, %v456
          %v560 = vpack.c.bf16 %v458, %v458
          %v563 = vcombine.low %v559, %v560
          %v565 = vunpack.c.l.s4 1983009808
          %v566 = vunpack.c.0.s8 %v565
          %v567 = vlaneseq
          %v568 = vshrl.u32 %v567, 7
          %v569 = vsub.s32 %v566, %v568
          %v570 = vrot.slane %v563, %v569
          %572 = vst [vmem:[#allocation2] sm:$0xf] %v570
          %v573 = vpack.c.bf16 %v545, %v541
          %v574 = vpack.c.bf16 %v547, %v543
          %v575 = vpack.c.bf16 %v555, %v551
          %v576 = vpack.c.bf16 %v557, %v553
          %v581 = vunpack.c.l.b16 %v573
          %v582 = vunpack.c.l.b16 %v574
          %v583 = vunpack.c.h.b16 %v573
          %v584 = vunpack.c.h.b16 %v574
          %v585 = vunpack.c.l.b16 %v575
          %v586 = vunpack.c.l.b16 %v576
          %v587 = vunpack.c.h.b16 %v575
          %v588 = vunpack.c.h.b16 %v576
          %v589 = vpack.c.b16 %v582, %v581
          %v590 = vpack.c.b16 %v584, %v583
          %v591 = vpack.c.b16 %v586, %v585
          %v592 = vpack.c.b16 %v588, %v587
          %597 = vst [vmem:[#allocation3] sm:$0xff] %v589
          %598 = vst [vmem:[#allocation3 + $0x8] sm:$0xff] %v590
          %599 = vst [vmem:[#allocation3 + $0x10] sm:$0xff] %v591
          %600 = vst [vmem:[#allocation3 + $0x18] sm:$0xff] %v592
        $region60: #{tpu_custom_call.1} parent=51 // pred_fallthru
          _
        %s601 = smul.u32 %s36, 128
        %s602 = sshra.s32 %s601, 7
        %s603 = sand.u32 %s601, 127
        %s604 = smul.addr %s602, 4
        %s605 = scalar_lea.vmem %s339, %s604 [#allocation5]
        %v606 = vld [vmem:[%s605] sm:$0xf]
        %v607 = vld [vmem:[%s605 + $0x8] sm:$0xf]
        %v608 = vld [vmem:[%s605 + $0x10] sm:$0xf]
        %v609 = vld [vmem:[%s605 + $0x18] sm:$0xf]
        %v610 = vld [vmem:[%s1] sm:$0x3]
        %v611 = vld [vmem:[%s2] sm:$0xf]
        %613 = vset.pattern.permute.xlu0 0
        %614 = vperm.xlu0 %613, %v611
        %v615 = vpop.permute.xlu0 %614
        %v621 = vunpack.c.l.b16 %v606
        %v622 = vunpack.c.l.b16 %v607
        %v623 = vunpack.c.l.b16 %v608
        %v624 = vunpack.c.l.b16 %v609
        %v625 = vpack.c.b16 %v622, %v621
        %v626 = vpack.c.b16 %v624, %v623
        %vm629 = vcmask 261120
        %v631 = vsel %vm629, %v610, 0
        %633 = vmatprep.subr.bf16.mxu0 0
        %634 = vmatpush1.bf16.msra.mxu0 0
        %635 = vmatprep.subr.bf16.mxu0 0
        %636 = vmatpush1.bf16.msra.mxu0 0
        %637 = vmatprep.subr.bf16.mxu0 0
        %638 = vmatpush1.bf16.msra.mxu0 0
        %639 = vmatprep.subr.bf16.mxu0 0
        %640 = vmatpush1.bf16.msra.mxu0 0
        %641 = vmatprep.subr.bf16.mxu0 0
        %642 = vmatpush1.bf16.msra.mxu0 0
        %643 = vmatprep.subr.bf16.mxu0 0
        %644 = vmatpush1.bf16.msra.mxu0 0
        %645 = vmatprep.subr.bf16.mxu0 0
        %646 = vmatpush1.bf16.msra.mxu0 %v626
        %647 = vmatprep.subr.bf16.mxu0 0
        %648 = vmatpush1.bf16.msra.mxu0 %v625
        %649 = vmatprep.subr.bf16.mxu0 0
        %650 = vmatpush2.bf16.msra.mxu0 0
        %651 = vmatprep.subr.bf16.mxu0 0
        %652 = vmatpush2.bf16.msra.mxu0 0
        %653 = vmatprep.subr.bf16.mxu0 0
        %654 = vmatpush2.bf16.msra.mxu0 0
        %655 = vmatprep.subr.bf16.mxu0 0
        %656 = vmatpush2.bf16.msra.mxu0 0
        %657 = vmatprep.subr.bf16.mxu0 0
        %658 = vmatpush2.bf16.msra.mxu0 0
        %659 = vmatprep.subr.bf16.mxu0 0
        %660 = vmatpush2.bf16.msra.mxu0 0
        %661 = vmatprep.subr.bf16.mxu0 0
        %662 = vmatpush2.bf16.msra.mxu0 0
        %663 = vmatprep.subr.bf16.mxu0 0
        %664 = vmatpush2.bf16.msra.mxu0 0
        %665 = vmatprep.mubr.bf16.mxu0 0
        %666 = vmatmul.mubr.bf16.gmra.mxu0 %v631
        %v667 = vpop.f32.mrf.mxu0
        %v668 = vadd.f32 %v615, %v667
        %v669 = vpop.f32.mrf.mxu0
        %v670 = vpop.f32.mrf.mxu0
        %v671 = vpop.f32.mrf.mxu0
        %672 = vdwg.mxu0
        %v673 = vpack.c.bf16 %v668, %v668
        %v674 = vld [vmem:[#allocation2] sm:$0xf]
        %675 = vxpose.xlu0.c.b16.start [1/8] %v673, 128
        %676 = vxpose.xlu0.c.b16.cont [2/8] 0, 128
        %677 = vxpose.xlu0.c.b16.cont [3/8] 0, 128
        %678 = vxpose.xlu0.c.b16.cont [4/8] 0, 128
        %679 = vxpose.xlu0.c.b16.cont [5/8] 0, 128
        %680 = vxpose.xlu0.c.b16.cont [6/8] 0, 128
        %681 = vxpose.xlu0.c.b16.cont [7/8] 0, 128
        %682 = vxpose.xlu0.c.b16.end [8/8] 0, 128
        %v683 = vpop.trf.xlu0
        %v684 = vpop.trf.xlu0
        %v685 = vpop.trf.xlu0
        %v686 = vpop.trf.xlu0
        %v687 = vpop.trf.xlu0
        %v688 = vpop.trf.xlu0
        %v689 = vpop.trf.xlu0
        %v690 = vpop.trf.xlu0
        %v693 = vunpack.c.l.s4 1983009808
        %v694 = vunpack.c.0.s8 %v693
        %v695 = vlaneseq
        %v696 = vshrl.u32 %v695, 7
        %v697 = vsub.s32 %v694, %v696
        %v698 = vrot.slane %v674, %v697
        %v699 = vcombine.high %v698, %v698
        %vm700 = vcmask 31744
        %v702 = vsel %vm700, %v683, 0
        %v705 = vsel %vm700, %v684, 0
        %v708 = vsel %vm700, %v685, 0
        %v711 = vsel %vm700, %v686, 0
        %v714 = vsel %vm700, %v687, 0
        %v717 = vsel %vm700, %v688, 0
        %v720 = vsel %vm700, %v689, 0
        %v723 = vsel %vm700, %v690, 0
        %vm725 = vcmask 1041408
        %v727 = vsel %vm725, %v698, 0
        %v730 = vsel %vm725, %v699, 0
        %732 = vmatprep.subr.bf16.mxu0 0
        %733 = vmatpush1.bf16.msra.mxu0 0
        %734 = vmatprep.subr.bf16.mxu0 0
        %735 = vmatpush1.bf16.msra.mxu0 0
        %736 = vmatprep.subr.bf16.mxu0 0
        %737 = vmatpush1.bf16.msra.mxu0 0
        %738 = vmatprep.subr.bf16.mxu0 0
        %739 = vmatpush1.bf16.msra.mxu0 0
        %740 = vmatprep.subr.bf16.mxu0 0
        %741 = vmatpush1.bf16.msra.mxu0 0
        %742 = vmatprep.subr.bf16.mxu0 0
        %743 = vmatpush1.bf16.msra.mxu0 0
        %744 = vmatprep.subr.bf16.mxu0 0
        %745 = vmatpush1.bf16.msra.mxu0 0
        %746 = vmatprep.subr.bf16.mxu0 %v730
        %747 = vmatpush1.bf16.msra.mxu0 %v727
        %748 = vmatprep.subr.bf16.mxu0 0
        %749 = vmatpush2.bf16.msra.mxu0 0
        %750 = vmatprep.subr.bf16.mxu0 0
        %751 = vmatpush2.bf16.msra.mxu0 0
        %752 = vmatprep.subr.bf16.mxu0 0
        %753 = vmatpush2.bf16.msra.mxu0 0
        %754 = vmatprep.subr.bf16.mxu0 0
        %755 = vmatpush2.bf16.msra.mxu0 0
        %756 = vmatprep.subr.bf16.mxu0 0
        %757 = vmatpush2.bf16.msra.mxu0 0
        %758 = vmatprep.subr.bf16.mxu0 0
        %759 = vmatpush2.bf16.msra.mxu0 0
        %760 = vmatprep.subr.bf16.mxu0 0
        %761 = vmatpush2.bf16.msra.mxu0 0
        %762 = vmatprep.subr.bf16.mxu0 0
        %763 = vmatpush2.bf16.msra.mxu0 0
        %764 = vmatprep.mubr.bf16.mxu0 0
        %765 = vmatmul.mubr.bf16.gmra.mxu0 %v702
        %v766 = vpop.f32.mrf.mxu0
        %v767 = vadd.f32 0.0, %v766
        %v768 = vpop.f32.mrf.mxu0
        %v769 = vadd.f32 0.0, %v768
        %v770 = vpop.f32.mrf.mxu0
        %v771 = vadd.f32 0.0, %v770
        %v772 = vpop.f32.mrf.mxu0
        %v773 = vadd.f32 0.0, %v772
        %774 = vmatprep.mubr.bf16.mxu0 0
        %775 = vmatmul.mubr.bf16.gmra.mxu0 %v705
        %v776 = vpop.f32.mrf.mxu0
        %v777 = vadd.f32 0.0, %v776
        %v778 = vpop.f32.mrf.mxu0
        %v779 = vadd.f32 0.0, %v778
        %v780 = vpop.f32.mrf.mxu0
        %v781 = vadd.f32 0.0, %v780
        %v782 = vpop.f32.mrf.mxu0
        %v783 = vadd.f32 0.0, %v782
        %784 = vmatprep.mubr.bf16.mxu0 0
        %785 = vmatmul.mubr.bf16.gmra.mxu0 %v708
        %v786 = vpop.f32.mrf.mxu0
        %v787 = vadd.f32 0.0, %v786
        %v788 = vpop.f32.mrf.mxu0
        %v789 = vadd.f32 0.0, %v788
        %v790 = vpop.f32.mrf.mxu0
        %v791 = vadd.f32 0.0, %v790
        %v792 = vpop.f32.mrf.mxu0
        %v793 = vadd.f32 0.0, %v792
        %794 = vmatprep.mubr.bf16.mxu0 0
        %795 = vmatmul.mubr.bf16.gmra.mxu0 %v711
        %v796 = vpop.f32.mrf.mxu0
        %v797 = vadd.f32 0.0, %v796
        %v798 = vpop.f32.mrf.mxu0
        %v799 = vadd.f32 0.0, %v798
        %v800 = vpop.f32.mrf.mxu0
        %v801 = vadd.f32 0.0, %v800
        %v802 = vpop.f32.mrf.mxu0
        %v803 = vadd.f32 0.0, %v802
        %804 = vmatprep.mubr.bf16.mxu0 0
        %805 = vmatmul.mubr.bf16.gmra.mxu0 %v714
        %v806 = vpop.f32.mrf.mxu0
        %v807 = vadd.f32 0.0, %v806
        %v808 = vpop.f32.mrf.mxu0
        %v809 = vadd.f32 0.0, %v808
        %v810 = vpop.f32.mrf.mxu0
        %v811 = vadd.f32 0.0, %v810
        %v812 = vpop.f32.mrf.mxu0
        %v813 = vadd.f32 0.0, %v812
        %814 = vmatprep.mubr.bf16.mxu0 0
        %815 = vmatmul.mubr.bf16.gmra.mxu0 %v717
        %v816 = vpop.f32.mrf.mxu0
        %v817 = vadd.f32 0.0, %v816
        %v818 = vpop.f32.mrf.mxu0
        %v819 = vadd.f32 0.0, %v818
        %v820 = vpop.f32.mrf.mxu0
        %v821 = vadd.f32 0.0, %v820
        %v822 = vpop.f32.mrf.mxu0
        %v823 = vadd.f32 0.0, %v822
        %824 = vmatprep.mubr.bf16.mxu0 0
        %825 = vmatmul.mubr.bf16.gmra.mxu0 %v720
        %v826 = vpop.f32.mrf.mxu0
        %v827 = vadd.f32 0.0, %v826
        %v828 = vpop.f32.mrf.mxu0
        %v829 = vadd.f32 0.0, %v828
        %v830 = vpop.f32.mrf.mxu0
        %v831 = vadd.f32 0.0, %v830
        %v832 = vpop.f32.mrf.mxu0
        %v833 = vadd.f32 0.0, %v832
        %834 = vmatprep.mubr.bf16.mxu0 0
        %835 = vmatmul.mubr.bf16.gmra.mxu0 %v723
        %v836 = vpop.f32.mrf.mxu0
        %v837 = vadd.f32 0.0, %v836
        %v838 = vpop.f32.mrf.mxu0
        %v839 = vadd.f32 0.0, %v838
        %v840 = vpop.f32.mrf.mxu0
        %v841 = vadd.f32 0.0, %v840
        %v842 = vpop.f32.mrf.mxu0
        %v843 = vadd.f32 0.0, %v842
        %844 = vdwg.mxu0
        %v845 = vmax.f32 %v767, %v769
        %846 = vmax.xlane.f32.xlu0 %v845
        %v847 = vpop.xlane.xlu0 %846
        %v848 = vmax.f32 %v771, %v773
        %849 = vmax.xlane.f32.xlu0 %v848
        %v850 = vpop.xlane.xlu0 %849
        %v851 = vmax.f32 %v777, %v779
        %852 = vmax.xlane.f32.xlu0 %v851
        %v853 = vpop.xlane.xlu0 %852
        %v854 = vmax.f32 %v781, %v783
        %855 = vmax.xlane.f32.xlu0 %v854
        %v856 = vpop.xlane.xlu0 %855
        %v857 = vmax.f32 %v787, %v789
        %858 = vmax.xlane.f32.xlu0 %v857
        %v859 = vpop.xlane.xlu0 %858
        %v860 = vmax.f32 %v791, %v793
        %861 = vmax.xlane.f32.xlu0 %v860
        %v862 = vpop.xlane.xlu0 %861
        %v863 = vmax.f32 %v797, %v799
        %864 = vmax.xlane.f32.xlu0 %v863
        %v865 = vpop.xlane.xlu0 %864
        %v866 = vmax.f32 %v801, %v803
        %867 = vmax.xlane.f32.xlu0 %v866
        %v868 = vpop.xlane.xlu0 %867
        %v869 = vmax.f32 %v807, %v809
        %870 = vmax.xlane.f32.xlu0 %v869
        %v871 = vpop.xlane.xlu0 %870
        %v872 = vmax.f32 %v811, %v813
        %873 = vmax.xlane.f32.xlu0 %v872
        %v874 = vpop.xlane.xlu0 %873
        %v875 = vmax.f32 %v817, %v819
        %876 = vmax.xlane.f32.xlu0 %v875
        %v877 = vpop.xlane.xlu0 %876
        %v878 = vmax.f32 %v821, %v823
        %879 = vmax.xlane.f32.xlu0 %v878
        %v880 = vpop.xlane.xlu0 %879
        %v881 = vmax.f32 %v827, %v829
        %882 = vmax.xlane.f32.xlu0 %v881
        %v883 = vpop.xlane.xlu0 %882
        %v884 = vmax.f32 %v831, %v833
        %885 = vmax.xlane.f32.xlu0 %v884
        %v886 = vpop.xlane.xlu0 %885
        %v887 = vmax.f32 %v837, %v839
        %888 = vmax.xlane.f32.xlu0 %v887
        %v889 = vpop.xlane.xlu0 %888
        %v890 = vmax.f32 %v841, %v843
        %891 = vmax.xlane.f32.xlu0 %v890
        %v892 = vpop.xlane.xlu0 %891
        %v893 = vsub.f32 %v767, %v847
        %v894 = vsub.f32 %v769, %v847
        %v895 = vsub.f32 %v771, %v850
        %v896 = vsub.f32 %v773, %v850
        %v897 = vsub.f32 %v777, %v853
        %v898 = vsub.f32 %v779, %v853
        %v899 = vsub.f32 %v781, %v856
        %v900 = vsub.f32 %v783, %v856
        %v901 = vsub.f32 %v787, %v859
        %v902 = vsub.f32 %v789, %v859
        %v903 = vsub.f32 %v791, %v862
        %v904 = vsub.f32 %v793, %v862
        %v905 = vsub.f32 %v797, %v865
        %v906 = vsub.f32 %v799, %v865
        %v907 = vsub.f32 %v801, %v868
        %v908 = vsub.f32 %v803, %v868
        %v909 = vsub.f32 %v807, %v871
        %v910 = vsub.f32 %v809, %v871
        %v911 = vsub.f32 %v811, %v874
        %v912 = vsub.f32 %v813, %v874
        %v913 = vsub.f32 %v817, %v877
        %v914 = vsub.f32 %v819, %v877
        %v915 = vsub.f32 %v821, %v880
        %v916 = vsub.f32 %v823, %v880
        %v917 = vsub.f32 %v827, %v883
        %v918 = vsub.f32 %v829, %v883
        %v919 = vsub.f32 %v831, %v886
        %v920 = vsub.f32 %v833, %v886
        %v921 = vsub.f32 %v837, %v889
        %v922 = vsub.f32 %v839, %v889
        %v923 = vsub.f32 %v841, %v892
        %v924 = vsub.f32 %v843, %v892
        %v925 = vmul.f32 %v893, 1.442695
        %v926 = vpow.pop %v925
        %v927 = vmul.f32 %v894, 1.442695
        %v928 = vpow.pop %v927
        %v929 = vmul.f32 %v895, 1.442695
        %v930 = vpow.pop %v929
        %v931 = vmul.f32 %v896, 1.442695
        %v932 = vpow.pop %v931
        %v933 = vmul.f32 %v897, 1.442695
        %v934 = vpow.pop %v933
        %v935 = vmul.f32 %v898, 1.442695
        %v936 = vpow.pop %v935
        %v937 = vmul.f32 %v899, 1.442695
        %v938 = vpow.pop %v937
        %v939 = vmul.f32 %v900, 1.442695
        %v940 = vpow.pop %v939
        %v941 = vmul.f32 %v901, 1.442695
        %v942 = vpow.pop %v941
        %v943 = vmul.f32 %v902, 1.442695
        %v944 = vpow.pop %v943
        %v945 = vmul.f32 %v903, 1.442695
        %v946 = vpow.pop %v945
        %v947 = vmul.f32 %v904, 1.442695
        %v948 = vpow.pop %v947
        %v949 = vmul.f32 %v905, 1.442695
        %v950 = vpow.pop %v949
        %v951 = vmul.f32 %v906, 1.442695
        %v952 = vpow.pop %v951
        %v953 = vmul.f32 %v907, 1.442695
        %v954 = vpow.pop %v953
        %v955 = vmul.f32 %v908, 1.442695
        %v956 = vpow.pop %v955
        %v957 = vmul.f32 %v909, 1.442695
        %v958 = vpow.pop %v957
        %v959 = vmul.f32 %v910, 1.442695
        %v960 = vpow.pop %v959
        %v961 = vmul.f32 %v911, 1.442695
        %v962 = vpow.pop %v961
        %v963 = vmul.f32 %v912, 1.442695
        %v964 = vpow.pop %v963
        %v965 = vmul.f32 %v913, 1.442695
        %v966 = vpow.pop %v965
        %v967 = vmul.f32 %v914, 1.442695
        %v968 = vpow.pop %v967
        %v969 = vmul.f32 %v915, 1.442695
        %v970 = vpow.pop %v969
        %v971 = vmul.f32 %v916, 1.442695
        %v972 = vpow.pop %v971
        %v973 = vmul.f32 %v917, 1.442695
        %v974 = vpow.pop %v973
        %v975 = vmul.f32 %v918, 1.442695
        %v976 = vpow.pop %v975
        %v977 = vmul.f32 %v919, 1.442695
        %v978 = vpow.pop %v977
        %v979 = vmul.f32 %v920, 1.442695
        %v980 = vpow.pop %v979
        %v981 = vmul.f32 %v921, 1.442695
        %v982 = vpow.pop %v981
        %v983 = vmul.f32 %v922, 1.442695
        %v984 = vpow.pop %v983
        %v985 = vmul.f32 %v923, 1.442695
        %v986 = vpow.pop %v985
        %v987 = vmul.f32 %v924, 1.442695
        %v988 = vpow.pop %v987
        %v989 = vpack.c.bf16 %v930, %v926
        %v990 = vpack.c.bf16 %v932, %v928
        %v991 = vpack.c.bf16 %v938, %v934
        %v992 = vpack.c.bf16 %v940, %v936
        %v993 = vpack.c.bf16 %v946, %v942
        %v994 = vpack.c.bf16 %v948, %v944
        %v995 = vpack.c.bf16 %v954, %v950
        %v996 = vpack.c.bf16 %v956, %v952
        %v997 = vpack.c.bf16 %v962, %v958
        %v998 = vpack.c.bf16 %v964, %v960
        %v999 = vpack.c.bf16 %v970, %v966
        %v1000 = vpack.c.bf16 %v972, %v968
        %v1001 = vpack.c.bf16 %v978, %v974
        %v1002 = vpack.c.bf16 %v980, %v976
        %v1003 = vpack.c.bf16 %v986, %v982
        %v1004 = vpack.c.bf16 %v988, %v984
        %v1005 = vld [vmem:[#allocation3] sm:$0xff]
        %v1006 = vld [vmem:[#allocation3 + $0x8] sm:$0xff]
        %v1007 = vld [vmem:[#allocation3 + $0x10] sm:$0xff]
        %v1008 = vld [vmem:[#allocation3 + $0x18] sm:$0xff]
        %v1013 = vunpack.c.l.b16 %v1005
        %v1014 = vunpack.c.h.b16 %v1005
        %v1015 = vunpack.c.l.b16 %v1006
        %v1016 = vunpack.c.h.b16 %v1006
        %v1017 = vunpack.c.l.b16 %v1007
        %v1018 = vunpack.c.h.b16 %v1007
        %v1019 = vunpack.c.l.b16 %v1008
        %v1020 = vunpack.c.h.b16 %v1008
        %v1021 = vpack.c.b16 %v1015, %v1013
        %v1022 = vpack.c.b16 %v1016, %v1014
        %v1023 = vpack.c.b16 %v1019, %v1017
        %v1024 = vpack.c.b16 %v1020, %v1018
        %1029 = vmatprep.subr.bf16.mxu0 %v1004
        %1030 = vmatpush1.bf16.xpose.msra.mxu0 %v1003
        %1031 = vmatprep.subr.bf16.mxu0 %v1002
        %1032 = vmatpush1.bf16.xpose.msra.mxu0 %v1001
        %1033 = vmatprep.subr.bf16.mxu0 %v1000
        %1034 = vmatpush1.bf16.xpose.msra.mxu0 %v999
        %1035 = vmatprep.subr.bf16.mxu0 %v998
        %1036 = vmatpush1.bf16.xpose.msra.mxu0 %v997
        %1037 = vmatprep.subr.bf16.mxu0 %v996
        %1038 = vmatpush1.bf16.xpose.msra.mxu0 %v995
        %1039 = vmatprep.subr.bf16.mxu0 %v994
        %1040 = vmatpush1.bf16.xpose.msra.mxu0 %v993
        %1041 = vmatprep.subr.bf16.mxu0 %v992
        %1042 = vmatpush1.bf16.xpose.msra.mxu0 %v991
        %1043 = vmatprep.subr.bf16.mxu0 %v990
        %1044 = vmatpush1.bf16.xpose.msra.mxu0 %v989
        %1045 = vmatprep.subr.bf16.mxu0 0
        %1046 = vmatpush2.bf16.xpose.msra.mxu0 0
        %1047 = vmatprep.subr.bf16.mxu0 0
        %1048 = vmatpush2.bf16.xpose.msra.mxu0 0
        %1049 = vmatprep.subr.bf16.mxu0 0
        %1050 = vmatpush2.bf16.xpose.msra.mxu0 0
        %1051 = vmatprep.subr.bf16.mxu0 0
        %1052 = vmatpush2.bf16.xpose.msra.mxu0 0
        %1053 = vmatprep.subr.bf16.mxu0 0
        %1054 = vmatpush2.bf16.xpose.msra.mxu0 0
        %1055 = vmatprep.subr.bf16.mxu0 0
        %1056 = vmatpush2.bf16.xpose.msra.mxu0 0
        %1057 = vmatprep.subr.bf16.mxu0 0
        %1058 = vmatpush2.bf16.xpose.msra.mxu0 0
        %1059 = vmatprep.subr.bf16.mxu0 0
        %1060 = vmatpush2.bf16.xpose.msra.mxu0 0
        %1061 = vmatprep.mubr.bf16.mxu0 %v1022
        %1062 = vmatmul.mubr.bf16.gmra.mxu0 %v1021
        %v1063 = vpop.f32.mrf.mxu0
        %v1064 = vadd.f32 0.0, %v1063
        %v1065 = vpop.f32.mrf.mxu0
        %v1066 = vpop.f32.mrf.mxu0
        %v1067 = vadd.f32 0.0, %v1066
        %v1068 = vpop.f32.mrf.mxu0
        %1069 = vmatprep.mubr.bf16.mxu0 %v1024
        %1070 = vmatmul.mubr.bf16.gmra.mxu0 %v1023
        %v1071 = vpop.f32.mrf.mxu0
        %v1072 = vadd.f32 0.0, %v1071
        %v1073 = vpop.f32.mrf.mxu0
        %v1074 = vpop.f32.mrf.mxu0
        %v1075 = vadd.f32 0.0, %v1074
        %v1076 = vpop.f32.mrf.mxu0
        %1077 = vdwg.mxu0
        %1078 = vmatprep.subr.bf16.mxu0 %v1004
        %1079 = vmatpush1.bf16.xpose.msra.mxu0 %v1003
        %1080 = vmatprep.subr.bf16.mxu0 %v1002
        %1081 = vmatpush1.bf16.xpose.msra.mxu0 %v1001
        %1082 = vmatprep.subr.bf16.mxu0 %v1000
        %1083 = vmatpush1.bf16.xpose.msra.mxu0 %v999
        %1084 = vmatprep.subr.bf16.mxu0 %v998
        %1085 = vmatpush1.bf16.xpose.msra.mxu0 %v997
        %1086 = vmatprep.subr.bf16.mxu0 %v996
        %1087 = vmatpush1.bf16.xpose.msra.mxu0 %v995
        %1088 = vmatprep.subr.bf16.mxu0 %v994
        %1089 = vmatpush1.bf16.xpose.msra.mxu0 %v993
        %1090 = vmatprep.subr.bf16.mxu0 %v992
        %1091 = vmatpush1.bf16.xpose.msra.mxu0 %v991
        %1092 = vmatprep.subr.bf16.mxu0 %v990
        %1093 = vmatpush1.bf16.xpose.msra.mxu0 %v989
        %1094 = vmatprep.subr.bf16.mxu0 0
        %1095 = vmatpush2.bf16.xpose.msra.mxu0 0
        %1096 = vmatprep.subr.bf16.mxu0 0
        %1097 = vmatpush2.bf16.xpose.msra.mxu0 0
        %1098 = vmatprep.subr.bf16.mxu0 0
        %1099 = vmatpush2.bf16.xpose.msra.mxu0 0
        %1100 = vmatprep.subr.bf16.mxu0 0
        %1101 = vmatpush2.bf16.xpose.msra.mxu0 0
        %1102 = vmatprep.subr.bf16.mxu0 0
        %1103 = vmatpush2.bf16.xpose.msra.mxu0 0
        %1104 = vmatprep.subr.bf16.mxu0 0
        %1105 = vmatpush2.bf16.xpose.msra.mxu0 0
        %1106 = vmatprep.subr.bf16.mxu0 0
        %1107 = vmatpush2.bf16.xpose.msra.mxu0 0
        %1108 = vmatprep.subr.bf16.mxu0 0
        %1109 = vmatpush2.bf16.xpose.msra.mxu0 0
        %1110 = vmatprep.mubr.bf16.mxu0 1065369472
        %1111 = vmatmul.mubr.bf16.gmra.mxu0 1065369472
        %v1112 = vpop.f32.mrf.mxu0
        %v1113 = vadd.f32 0.0, %v1112
        %v1114 = vpop.f32.mrf.mxu0
        %v1115 = vpop.f32.mrf.mxu0
        %v1116 = vpop.f32.mrf.mxu0
        %1117 = vdwg.mxu0
        %v1118 = vrcp.pop %v1113
        %v1119 = vadd.f32 %v926, %v928
        %1120 = vadd.xlane.f32.xlu0 %v1119
        %v1121 = vpop.xlane.xlu0 %1120
        %v1122 = vadd.f32 %v930, %v932
        %1123 = vadd.xlane.f32.xlu0 %v1122
        %v1124 = vpop.xlane.xlu0 %1123
        %v1125 = vadd.f32 %v934, %v936
        %1126 = vadd.xlane.f32.xlu0 %v1125
        %v1127 = vpop.xlane.xlu0 %1126
        %v1128 = vadd.f32 %v938, %v940
        %1129 = vadd.xlane.f32.xlu0 %v1128
        %v1130 = vpop.xlane.xlu0 %1129
        %v1131 = vadd.f32 %v942, %v944
        %1132 = vadd.xlane.f32.xlu0 %v1131
        %v1133 = vpop.xlane.xlu0 %1132
        %v1134 = vadd.f32 %v946, %v948
        %1135 = vadd.xlane.f32.xlu0 %v1134
        %v1136 = vpop.xlane.xlu0 %1135
        %v1137 = vadd.f32 %v950, %v952
        %1138 = vadd.xlane.f32.xlu0 %v1137
        %v1139 = vpop.xlane.xlu0 %1138
        %v1140 = vadd.f32 %v954, %v956
        %1141 = vadd.xlane.f32.xlu0 %v1140
        %v1142 = vpop.xlane.xlu0 %1141
        %v1143 = vadd.f32 %v958, %v960
        %1144 = vadd.xlane.f32.xlu0 %v1143
        %v1145 = vpop.xlane.xlu0 %1144
        %v1146 = vadd.f32 %v962, %v964
        %1147 = vadd.xlane.f32.xlu0 %v1146
        %v1148 = vpop.xlane.xlu0 %1147
        %v1149 = vadd.f32 %v966, %v968
        %1150 = vadd.xlane.f32.xlu0 %v1149
        %v1151 = vpop.xlane.xlu0 %1150
        %v1152 = vadd.f32 %v970, %v972
        %1153 = vadd.xlane.f32.xlu0 %v1152
        %v1154 = vpop.xlane.xlu0 %1153
        %v1155 = vadd.f32 %v974, %v976
        %1156 = vadd.xlane.f32.xlu0 %v1155
        %v1157 = vpop.xlane.xlu0 %1156
        %v1158 = vadd.f32 %v978, %v980
        %1159 = vadd.xlane.f32.xlu0 %v1158
        %v1160 = vpop.xlane.xlu0 %1159
        %v1161 = vadd.f32 %v982, %v984
        %1162 = vadd.xlane.f32.xlu0 %v1161
        %v1163 = vpop.xlane.xlu0 %1162
        %v1164 = vadd.f32 %v986, %v988
        %1165 = vadd.xlane.f32.xlu0 %v1164
        %v1166 = vpop.xlane.xlu0 %1165
        %v1167 = vrcp.pop %v1121
        %v1168 = vrcp.pop %v1124
        %v1169 = vrcp.pop %v1127
        %v1170 = vrcp.pop %v1130
        %v1171 = vrcp.pop %v1133
        %v1172 = vrcp.pop %v1136
        %v1173 = vrcp.pop %v1139
        %v1174 = vrcp.pop %v1142
        %v1175 = vrcp.pop %v1145
        %v1176 = vrcp.pop %v1148
        %v1177 = vrcp.pop %v1151
        %v1178 = vrcp.pop %v1154
        %v1179 = vrcp.pop %v1157
        %v1180 = vrcp.pop %v1160
        %v1181 = vrcp.pop %v1163
        %v1182 = vrcp.pop %v1166
        %v1183 = vmul.f32 %v926, %v1167
        %v1184 = vmul.f32 %v928, %v1167
        %v1185 = vmul.f32 %v930, %v1168
        %v1186 = vmul.f32 %v932, %v1168
        %v1187 = vmul.f32 %v934, %v1169
        %v1188 = vmul.f32 %v936, %v1169
        %v1189 = vmul.f32 %v938, %v1170
        %v1190 = vmul.f32 %v940, %v1170
        %v1191 = vmul.f32 %v942, %v1171
        %v1192 = vmul.f32 %v944, %v1171
        %v1193 = vmul.f32 %v946, %v1172
        %v1194 = vmul.f32 %v948, %v1172
        %v1195 = vmul.f32 %v950, %v1173
        %v1196 = vmul.f32 %v952, %v1173
        %v1197 = vmul.f32 %v954, %v1174
        %v1198 = vmul.f32 %v956, %v1174
        %v1199 = vmul.f32 %v958, %v1175
        %v1200 = vmul.f32 %v960, %v1175
        %v1201 = vmul.f32 %v962, %v1176
        %v1202 = vmul.f32 %v964, %v1176
        %v1203 = vmul.f32 %v966, %v1177
        %v1204 = vmul.f32 %v968, %v1177
        %v1205 = vmul.f32 %v970, %v1178
        %v1206 = vmul.f32 %v972, %v1178
        %v1207 = vmul.f32 %v974, %v1179
        %v1208 = vmul.f32 %v976, %v1179
        %v1209 = vmul.f32 %v978, %v1180
        %v1210 = vmul.f32 %v980, %v1180
        %v1211 = vmul.f32 %v982, %v1181
        %v1212 = vmul.f32 %v984, %v1181
        %v1213 = vmul.f32 %v986, %v1182
        %v1214 = vmul.f32 %v988, %v1182
        %v1215 = vpack.c.bf16 %v1185, %v1183
        %v1216 = vpack.c.bf16 %v1186, %v1184
        %v1217 = vpack.c.bf16 %v1189, %v1187
        %v1218 = vpack.c.bf16 %v1190, %v1188
        %v1219 = vpack.c.bf16 %v1193, %v1191
        %v1220 = vpack.c.bf16 %v1194, %v1192
        %v1221 = vpack.c.bf16 %v1197, %v1195
        %v1222 = vpack.c.bf16 %v1198, %v1196
        %v1223 = vpack.c.bf16 %v1201, %v1199
        %v1224 = vpack.c.bf16 %v1202, %v1200
        %v1225 = vpack.c.bf16 %v1205, %v1203
        %v1226 = vpack.c.bf16 %v1206, %v1204
        %v1227 = vpack.c.bf16 %v1209, %v1207
        %v1228 = vpack.c.bf16 %v1210, %v1208
        %v1229 = vpack.c.bf16 %v1213, %v1211
        %v1230 = vpack.c.bf16 %v1214, %v1212
        %v1247 = vunpack.c.l.b16 %v1215
        %v1248 = vunpack.c.l.b16 %v1216
        %v1249 = vunpack.c.h.b16 %v1215
        %v1250 = vunpack.c.h.b16 %v1216
        %v1251 = vunpack.c.l.b16 %v1217
        %v1252 = vunpack.c.l.b16 %v1218
        %v1253 = vunpack.c.h.b16 %v1217
        %v1254 = vunpack.c.h.b16 %v1218
        %v1255 = vunpack.c.l.b16 %v1219
        %v1256 = vunpack.c.l.b16 %v1220
        %v1257 = vunpack.c.h.b16 %v1219
        %v1258 = vunpack.c.h.b16 %v1220
        %v1259 = vunpack.c.l.b16 %v1221
        %v1260 = vunpack.c.l.b16 %v1222
        %v1261 = vunpack.c.h.b16 %v1221
        %v1262 = vunpack.c.h.b16 %v1222
        %v1263 = vunpack.c.l.b16 %v1223
        %v1264 = vunpack.c.l.b16 %v1224
        %v1265 = vunpack.c.h.b16 %v1223
        %v1266 = vunpack.c.h.b16 %v1224
        %v1267 = vunpack.c.l.b16 %v1225
        %v1268 = vunpack.c.l.b16 %v1226
        %v1269 = vunpack.c.h.b16 %v1225
        %v1270 = vunpack.c.h.b16 %v1226
        %v1271 = vunpack.c.l.b16 %v1227
        %v1272 = vunpack.c.l.b16 %v1228
        %v1273 = vunpack.c.h.b16 %v1227
        %v1274 = vunpack.c.h.b16 %v1228
        %v1275 = vunpack.c.l.b16 %v1229
        %v1276 = vunpack.c.l.b16 %v1230
        %v1277 = vunpack.c.h.b16 %v1229
        %v1278 = vunpack.c.h.b16 %v1230
        %v1279 = vpack.c.b16 %v1248, %v1247
        %v1280 = vpack.c.b16 %v1250, %v1249
        %v1281 = vpack.c.b16 %v1252, %v1251
        %v1282 = vpack.c.b16 %v1254, %v1253
        %v1283 = vpack.c.b16 %v1256, %v1255
        %v1284 = vpack.c.b16 %v1258, %v1257
        %v1285 = vpack.c.b16 %v1260, %v1259
        %v1286 = vpack.c.b16 %v1262, %v1261
        %v1287 = vpack.c.b16 %v1264, %v1263
        %v1288 = vpack.c.b16 %v1266, %v1265
        %v1289 = vpack.c.b16 %v1268, %v1267
        %v1290 = vpack.c.b16 %v1270, %v1269
        %v1291 = vpack.c.b16 %v1272, %v1271
        %v1292 = vpack.c.b16 %v1274, %v1273
        %v1293 = vpack.c.b16 %v1276, %v1275
        %v1294 = vpack.c.b16 %v1278, %v1277
        %1311 = vst [vmem:[%s378] sm:$0xff] %v1279
        %1312 = vst [vmem:[%s378 + $0x8] sm:$0xff] %v1280
        %1313 = vst [vmem:[%s378 + $0x10] sm:$0xff] %v1281
        %1314 = vst [vmem:[%s378 + $0x18] sm:$0xff] %v1282
        %1315 = vst [vmem:[%s378 + $0x20] sm:$0xff] %v1283
        %1316 = vst [vmem:[%s378 + $0x28] sm:$0xff] %v1284
        %1317 = vst [vmem:[%s378 + $0x30] sm:$0xff] %v1285
        %1318 = vst [vmem:[%s378 + $0x38] sm:$0xff] %v1286
        %1319 = vst [vmem:[%s378 + $0x40] sm:$0xff] %v1287
        %1320 = vst [vmem:[%s378 + $0x48] sm:$0xff] %v1288
        %1321 = vst [vmem:[%s378 + $0x50] sm:$0xff] %v1289
        %1322 = vst [vmem:[%s378 + $0x58] sm:$0xff] %v1290
        %1323 = vst [vmem:[%s378 + $0x60] sm:$0xff] %v1291
        %1324 = vst [vmem:[%s378 + $0x68] sm:$0xff] %v1292
        %1325 = vst [vmem:[%s378 + $0x70] sm:$0xff] %v1293
        %1326 = vst [vmem:[%s378 + $0x78] sm:$0xff] %v1294
        %s1327 = sld [smem:[#allocation4]]
        %v1328 = vlaneseq
        %v1329 = vshrl.u32 %v1328, 7
        %v1330 = vsub.s32 0, %v1329
        %v1331 = vrot.slane %v1118, %v1330
        %v1332 = vmul.f32 %v1064, %v1331
        %v1333 = vmul.f32 %v1067, %v1331
        %v1334 = vmul.f32 %v1072, %v1331
        %v1335 = vmul.f32 %v1075, %v1331
        %v1336 = vstv %s1327
        %v1337 = vmul.f32 %v1336, %v1332
        %v1338 = vmul.f32 %v1336, %v1333
        %v1339 = vmul.f32 %v1336, %v1334
        %v1340 = vmul.f32 %v1336, %v1335
        %v1341 = vunpack.c.l.bf16 %v606
        %v1342 = vunpack.c.l.bf16 %v607
        %v1343 = vunpack.c.l.bf16 %v608
        %v1344 = vunpack.c.l.bf16 %v609
        %v1345 = vadd.f32 %v1337, %v1341
        %v1346 = vadd.f32 %v1338, %v1342
        %v1347 = vadd.f32 %v1339, %v1343
        %v1348 = vadd.f32 %v1340, %v1344
        %1349 = vst [vmem:[%s371] sm:$0xff] %v1345
        %1350 = vst [vmem:[%s371 + $0x8] sm:$0xff] %v1346
        %1351 = vst [vmem:[%s371 + $0x10] sm:$0xff] %v1347
        %1352 = vst [vmem:[%s371 + $0x18] sm:$0xff] %v1348
        %s1353 = sand.u32 %s226, 1
        %s1354 = scalar_lea.sflag [#allocation7], %s1353
        %s1355 = sand.u32 %s226, 1
        %s1356 = smul.addr %s1355, 32
        %s1357 = scalar_lea.vmem [#allocation8], %s1356
        %s1358 = sand.u32 %s254, 1
        %s1359 = scalar_lea.sflag [#allocation10], %s1358
        %s1360 = sand.u32 %s254, 1
        %s1361 = smul.addr %s1360, 128
        %s1362 = scalar_lea.vmem [#allocation9], %s1361
        // Predicated region
        $region61: #{tpu_custom_call.1} parent=51 // pred_check
          %p1363 = pneg %p236
        $region62: #{tpu_custom_call.1} parent=51 // pred_check_branch
          %1365 = sbr.rel (%p1363) target = $region64
        $region63: #{tpu_custom_call.1} parent=51 // pred_region
          %s1367 = ssub.s32 512, 512
          %1368 = vsyncadd %s1354, %s1367
          %s1369 = smul.addr %s35, 8
          %s1370 = sadd.s32 %s36, %s1369
          %s1371 = smul.addr %s1370, 128
          %s1372 = scalar_lea.hbm %s8, %s1371
          %s1373 = sshll.u32 %s1357, 4
          %s1374 = int_to_ptr.vmem [resolvable:$true] %s1373
          %1379 = dma.vmem_to_hbm [thread:$0]  %s1374, 512, %s1372, %s1354, 128, 256, 8
        $region64: #{tpu_custom_call.1} parent=51 // pred_fallthru
          _
        // Predicated region
        $region65: #{tpu_custom_call.1} parent=51 // pred_check
          %p1380 = pneg %p264
        $region66: #{tpu_custom_call.1} parent=51 // pred_check_branch
          %1382 = sbr.rel (%p1380) target = $region68
        $region67: #{tpu_custom_call.1} parent=51 // pred_region
          %s1383 = smul.u32 16, %s36
          %s1385 = ssub.s32 2048, 2048
          %1386 = vsyncadd %s1359, %s1385
          %s1387 = smul.addr %s1383, 2
          %s1388 = smul.addr %s35, 64
          %s1389 = sadd.s32 %s1387, %s1388
          %s1390 = smul.addr %s1389, 64
          %s1391 = scalar_lea.hbm %s9, %s1390
          %s1392 = sshll.u32 %s1362, 4
          %s1393 = int_to_ptr.vmem [resolvable:$true] %s1392
          %1398 = dma.vmem_to_hbm [thread:$0]  %s1393, 2048, %s1391, %s1359, 128, 128, 8
        $region68: #{tpu_custom_call.1} parent=51 // pred_fallthru
          _
      $region52: #{tpu_custom_call.1} parent=5 // pred_fallthru
        _
      %p1399 = scmp.le.s32.totalorder 2, %s26
      // Predicated region
      $region69: #{tpu_custom_call.1} parent=5 // pred_check
        %p1400 = pneg %p1399
      $region70: #{tpu_custom_call.1} parent=5 // pred_check_branch
        %1402 = sbr.rel (%p1400) target = $region72
      $region71: #{tpu_custom_call.1} parent=5 // pred_region
        %s1403 = ssub.s32 %s26, 2
        // Predicated region
        $region73: #{tpu_custom_call.1} parent=71 // pred_check
          %p1404 = pneg %p242
        $region74: #{tpu_custom_call.1} parent=71 // pred_check_branch
          %1406 = sbr.rel (%p1404) target = $region76
        $region75: #{tpu_custom_call.1} parent=71 // pred_region
          %s1407 = sand.u32 %s227, 1
          %s1408 = scalar_lea.sflag [#allocation7], %s1407
          %s1409 = sand.u32 %s227, 1
          %s1410 = smul.addr %s1409, 32
          %s1411 = scalar_lea.vmem [#allocation8], %s1410
          %1412 = dma.done %s1408, 512
        $region76: #{tpu_custom_call.1} parent=71 // pred_fallthru
          _
        // Predicated region
        $region77: #{tpu_custom_call.1} parent=71 // pred_check
          %p1413 = pneg %p270
        $region78: #{tpu_custom_call.1} parent=71 // pred_check_branch
          %1415 = sbr.rel (%p1413) target = $region80
        $region79: #{tpu_custom_call.1} parent=71 // pred_region
          %s1416 = sand.u32 %s255, 1
          %s1417 = scalar_lea.sflag [#allocation10], %s1416
          %s1418 = sand.u32 %s255, 1
          %s1419 = smul.addr %s1418, 128
          %s1420 = scalar_lea.vmem [#allocation9], %s1419
          %1421 = dma.done %s1417, 2048
        $region80: #{tpu_custom_call.1} parent=71 // pred_fallthru
          _
      $region72: #{tpu_custom_call.1} parent=5 // pred_fallthru
        _
    $region6: #{tpu_custom_call.1} parent=1 // loop_footer
      %s30 = sadd.s32 1, %s26
    $region7: #{tpu_custom_call.1} parent=1 // loop_footer_branch
      %25 = sbr.rel target = $region3
    $region8: #{tpu_custom_call.1} parent=1 // loop_exit
      _
    %1422 = vsyncpa [#allocation6], 1
    %s1423 = scalar_lea.sflag [#allocation6], 1
    %1424 = vsyncpa %s1423, 1
    %1425 = vsyncpa [#allocation7], 1
    %s1426 = scalar_lea.sflag [#allocation7], 1
    %1427 = vsyncpa %s1426, 1
    %1428 = vsyncpa [#allocation10], 1
    %s1429 = scalar_lea.sflag [#allocation10], 1
    %1430 = vsyncpa %s1429, 1

</llo_original>
